<compile_context>
chip_gen: v7x
topology: tpu7x:2x2x1
jax: 0.10.0
libtpu: 0.0.40
codegen_flags: <defaults>
</compile_context>

<pallas_src>
import math
import functools

import jax
import jax.numpy as jnp
import numpy as np
from jax.experimental import pallas as pl
from jax.experimental.pallas import tpu as pltpu

LN_EPS = 1e-5  # PyTorch nn.LayerNorm default


def _layernorm(v, w, b):
    mu = jnp.mean(v, axis=-1, keepdims=True)
    var = jnp.mean((v - mu) ** 2, axis=-1, keepdims=True)
    return (v - mu) * jax.lax.rsqrt(var + LN_EPS) * w + b


def _erf(x, approx_recip=False):
    # Abramowitz & Stegun 7.1.26 rational approximation.
    # approx_recip=True routes the divide to the EUP (pl.reciprocal), which is
    # what the kernel uses on the (R, 4H) FFN activation; the plain-JAX
    # reference keeps the exact divide.
    a1, a2, a3, a4, a5 = 0.254829592, -0.284496736, 1.421413741, -1.453152027, 1.061405429
    p = 0.3275911
    sgn = jnp.where(x >= 0.0, 1.0, -1.0)
    ax = jnp.abs(x)
    u = 1.0 + p * ax
    t = pl.reciprocal(u, approx=True) if approx_recip else 1.0 / u
    poly = ((((a5 * t + a4) * t + a3) * t + a2) * t + a1) * t
    return sgn * (1.0 - poly * jnp.exp(-ax * ax))


def _gelu_exact(x, approx_recip=False):
    return 0.5 * x * (1.0 + _erf(x * 0.7071067811865476, approx_recip=approx_recip))


def resampler_block_kernel(num_heads,
                           hs_ref, x_ref,
                           wq_ref, bq_ref, wkv_ref, bkv_ref, wo_ref, bo_ref,
                           ln_img_w_ref, ln_img_b_ref,
                           ln_hid_w_ref, ln_hid_b_ref,
                           ln_ffn_w_ref, ln_ffn_b_ref,
                           w1_ref, b1_ref, w2_ref, b2_ref,
                           out_ref):
    f32 = jnp.float32
    BB, N, H = hs_ref.shape                 # (batch_block, queries, hidden)
    M, IH = x_ref.shape[1], x_ref.shape[2]  # (image tokens, image hidden)
    nh = num_heads
    d = H // nh
    scale = 1.0 / math.sqrt(d)
    cdt = wq_ref.dtype                      # MXU compute dtype (bf16)
    R = BB * N
    S = BB * M

    # (BB, N, H) -> (R, H): trivial squeeze for BB == 1; tile-aligned merge
    # otherwise (wrapper guarantees N % 8 == 0 and M % 8 == 0 when BB > 1).
    hs = hs_ref[...].reshape(R, H).astype(f32)
    xi = x_ref[...].reshape(S, IH).astype(f32)

    # Pre-norms in f32 on the VPU, single cast to the MXU dtype.
    hn = _layernorm(hs, ln_hid_w_ref[...], ln_hid_b_ref[...]).astype(cdt)
    xn = _layernorm(xi, ln_img_w_ref[...], ln_img_b_ref[...]).astype(cdt)

    # Q projection and fused K/V projection: tall bf16 matmuls, f32 accum.
    q = jnp.dot(hn, wq_ref[...], preferred_element_type=f32) + bq_ref[...]
    kv = jnp.dot(xn, wkv_ref[...], preferred_element_type=f32) + bkv_ref[...]
    q = (q * scale).astype(cdt)             # 1/sqrt(d) applied once, then bf16
    k = kv[:, :H].astype(cdt)               # lane-aligned split of fused KV
    v = kv[:, H:].astype(cdt)

    # Head-major, block-diagonal layout: contraction-batch axis g = b*nh + h.
    # Lane slices + stack keep the head split on ops with guaranteed Mosaic
    # lowerings. TODO(synk): switch to a layout-aware pltpu.einshape
    # ('(bn)(hd)->(bh)nd') to drop the per-head sub-128-lane slice relayouts
    # and allow larger batch blocks without unrolling.
    def split_heads(t, rows):
        parts = [t[b * rows:(b + 1) * rows, h * d:(h + 1) * d]
                 for b in range(BB) for h in range(nh)]
        return jnp.stack(parts, axis=0)      # (BB*nh, rows, d), bf16

    q3 = split_heads(q, N)                   # (G, N, d)
    k3 = split_heads(k, M)                   # (G, M, d)
    v3 = split_heads(v, M)                   # (G, M, d)

    # Scores / softmax: bf16 operands into the MXU, f32 accumulation; softmax
    # statistics stay f32.  Block-diagonal, so no cross-batch mask is needed.
    s = jnp.einsum('gnd,gmd->gnm', q3, k3, preferred_element_type=f32)
    s = s - jnp.max(s, axis=-1, keepdims=True)
    e = jnp.exp(s)
    inv = pl.reciprocal(jnp.sum(e, axis=-1, keepdims=True), approx=True)
    o3 = jnp.einsum('gnm,gmd->gnd', e.astype(cdt), v3,
                    preferred_element_type=f32) * inv       # (G, N, d), f32

    # Concat heads back to (R, H) and run a single K=H output projection.
    o_rows = []
    for b in range(BB):
        o_rows.append(jnp.concatenate(
            [o3[b * nh + h] for h in range(nh)], axis=-1))   # (N, H)
    o = o_rows[0] if BB == 1 else jnp.concatenate(o_rows, axis=0)  # (R, H)
    attn = jnp.dot(o.astype(cdt), wo_ref[...], preferred_element_type=f32)
    out = attn + bo_ref[...] + hs             # first residual (f32)

    # FFN (pre-norm, exact-erf GELU with EUP reciprocal); dropouts = identity.
    res = out
    f = _layernorm(out, ln_ffn_w_ref[...], ln_ffn_b_ref[...]).astype(cdt)
    h1 = jnp.dot(f, w1_ref[...], preferred_element_type=f32) + b1_ref[...]
    h1 = _gelu_exact(h1, approx_recip=True).astype(cdt)
    h2 = jnp.dot(h1, w2_ref[...], preferred_element_type=f32) + b2_ref[...]
    out_ref[...] = (res + h2).reshape(BB, N, H).astype(out_ref.dtype)


PARAM_ORDER = [
    "wq", "bq", "wkv", "bkv", "wo", "bo",
    "ln_img_w", "ln_img_b", "ln_hid_w", "ln_hid_b", "ln_ffn_w", "ln_ffn_b",
    "w1", "b1", "w2", "b2",
]


def resampler_block(hidden_states, x, params, num_heads, *,
                    batch_block=None, compute_dtype=jnp.bfloat16,
                    stream_dtype=jnp.bfloat16,
                    vmem_limit_bytes=40 * 1024 * 1024):
    B, N, H = hidden_states.shape
    _, M, IH = x.shape
    assert H % num_heads == 0

    # Batch-block selection:
    #   * keep >= 2 grid steps whenever B >= 2 (v7x shards the "parallel" grid
    #     axis across its 2 TensorCores; a single step idles one core),
    #   * target a few hundred rows per step to amortize per-step overhead,
    #   * cap the block (the block-diagonal attention is unrolled per batch
    #     element in-kernel),
    #   * BB > 1 additionally needs N, M multiples of 8 for the in-kernel row
    #     merge; otherwise drop to BB = 1 (predictable, never collapses G).
    if batch_block is None:
        bb = max(1, min(256 // max(N, 1), 8))
        if B >= 2:
            bb = min(bb, B // 2)
        bb = max(1, min(bb, B))
        while B % bb:
            bb -= 1
        batch_block = bb
    BB = batch_block
    if BB > 1 and (N % 8 or M % 8):
        BB = 1
    assert B % BB == 0
    G = B // BB

    cdt = compute_dtype
    ops = {
        "wq": params["wq"].astype(cdt), "bq": params["bq"],
        # Fused K/V projection: one (IH, 2H) weight, one matmul in-kernel.
        "wkv": jnp.concatenate([params["wk"], params["wv"]], axis=1).astype(cdt),
        "bkv": jnp.concatenate([params["bk"], params["bv"]], axis=1),
        "wo": params["wo"].astype(cdt), "bo": params["bo"],
        "ln_img_w": params["ln_img_w"], "ln_img_b": params["ln_img_b"],
        "ln_hid_w": params["ln_hid_w"], "ln_hid_b": params["ln_hid_b"],
        "ln_ffn_w": params["ln_ffn_w"], "ln_ffn_b": params["ln_ffn_b"],
        "w1": params["w1"].astype(cdt), "b1": params["b1"],
        "w2": params["w2"].astype(cdt), "b2": params["b2"],
    }
    op_list = [ops[k] for k in PARAM_ORDER]

    def _const_spec(a):
        # Constant-index weight block (same tile every grid step).
        # TODO(synk): single-buffer these constant blocks (pipeline_mode=
        # pl.Buffered(1)) and K-tile the w1/w2 FFN weights so large-H configs
        # fit v7x's 64 MiB VMEM; at these sizes they are a few hundred KiB.
        nd = a.ndim
        return pl.BlockSpec(tuple(a.shape), lambda i, nd=nd: (0,) * nd)

    # Stream activations in bf16 (halves HBM->VMEM DMA and the input
    # double-buffers); LayerNorm / residual math is upcast to f32 in-kernel.
    hs_in = hidden_states.astype(stream_dtype)
    x_in = x.astype(stream_dtype)

    in_specs = ([pl.BlockSpec((BB, N, H), lambda i: (i, 0, 0)),
                 pl.BlockSpec((BB, M, IH), lambda i: (i, 0, 0))]
                + [_const_spec(a) for a in op_list])

    kernel = functools.partial(resampler_block_kernel, num_heads)
    out = pl.pallas_call(
        kernel,
        out_shape=jax.ShapeDtypeStruct((B, N, H), hidden_states.dtype),
        grid=(G,),
        in_specs=in_specs,
        out_specs=pl.BlockSpec((BB, N, H), lambda i: (i, 0, 0)),
        compiler_params=pltpu.CompilerParams(
            dimension_semantics=("parallel",),
            vmem_limit_bytes=vmem_limit_bytes),
    )(hs_in, x_in, *op_list)
    return out


def resampler_block_ref(hidden_states, x, params, num_heads,
                        compute_dtype=jnp.bfloat16, stream_dtype=jnp.bfloat16):
    """Plain-JAX reference with the same dtype policy (bf16 matmuls, f32 accum)."""
    cdt = compute_dtype
    f32 = jnp.float32
    B, N, H = hidden_states.shape
    _, M, IH = x.shape
    d = H // num_heads
    scale = 1.0 / math.sqrt(d)

    hidden_states = hidden_states.astype(stream_dtype).astype(f32)
    x = x.astype(stream_dtype).astype(f32)

    xn = _layernorm(x, params["ln_img_w"], params["ln_img_b"]).astype(cdt)
    hn = _layernorm(hidden_states,
                    params["ln_hid_w"], params["ln_hid_b"]).astype(cdt)
    q = jnp.einsum('bni,io->bno', hn, params["wq"].astype(cdt),
                   preferred_element_type=f32) + params["bq"]
    k = jnp.einsum('bmi,io->bmo', xn, params["wk"].astype(cdt),
                   preferred_element_type=f32) + params["bk"]
    v = jnp.einsum('bmi,io->bmo', xn, params["wv"].astype(cdt),
                   preferred_element_type=f32) + params["bv"]
    q = (q * scale).astype(cdt).reshape(B, N, num_heads, d).transpose(0, 2, 1, 3)
    k = k.astype(cdt).reshape(B, M, num_heads, d).transpose(0, 2, 1, 3)
    v = v.astype(cdt).reshape(B, M, num_heads, d).transpose(0, 2, 1, 3)
    s = jnp.einsum('bhid,bhjd->bhij', q, k, preferred_element_type=f32)
    s = s - jnp.max(s, axis=-1, keepdims=True)
    p = jax.nn.softmax(s, axis=-1)
    o = jnp.einsum('bhij,bhjd->bhid', p.astype(cdt), v,
                   preferred_element_type=f32)
    o = o.transpose(0, 2, 1, 3).reshape(B, N, H)
    o = jnp.einsum('bni,io->bno', o.astype(cdt), params["wo"].astype(cdt),
                   preferred_element_type=f32) + params["bo"]
    o = o + hidden_states
    res = o
    o = _layernorm(o, params["ln_ffn_w"], params["ln_ffn_b"]).astype(cdt)
    h1 = jnp.einsum('bni,io->bno', o, params["w1"].astype(cdt),
                    preferred_element_type=f32) + params["b1"]
    h1 = _gelu_exact(h1).astype(cdt)
    h2 = jnp.einsum('bni,io->bno', h1, params["w2"].astype(cdt),
                    preferred_element_type=f32) + params["b2"]
    return (res + h2).astype(jnp.float32)


def make_params(key, hidden_size, image_hidden_size, intermediate_size):
    ks = jax.random.split(key, 16)
    s = 0.02
    return {
        "wq": jax.random.normal(ks[0], (hidden_size, hidden_size), jnp.float32) * s,
        "bq": jax.random.normal(ks[1], (1, hidden_size), jnp.float32) * s,
        "wk": jax.random.normal(ks[2], (image_hidden_size, hidden_size), jnp.float32) * s,
        "bk": jax.random.normal(ks[3], (1, hidden_size), jnp.float32) * s,
        "wv": jax.random.normal(ks[4], (image_hidden_size, hidden_size), jnp.float32) * s,
        "bv": jax.random.normal(ks[5], (1, hidden_size), jnp.float32) * s,
        "wo": jax.random.normal(ks[6], (hidden_size, hidden_size), jnp.float32) * s,
        "bo": jax.random.normal(ks[7], (1, hidden_size), jnp.float32) * s,
        "ln_img_w": 1.0 + 0.1 * jax.random.normal(ks[8], (1, image_hidden_size), jnp.float32),
        "ln_img_b": 0.1 * jax.random.normal(ks[9], (1, image_hidden_size), jnp.float32),
        "ln_hid_w": 1.0 + 0.1 * jax.random.normal(ks[10], (1, hidden_size), jnp.float32),
        "ln_hid_b": 0.1 * jax.random.normal(ks[11], (1, hidden_size), jnp.float32),
        "ln_ffn_w": 1.0 + 0.1 * jax.random.normal(ks[12], (1, hidden_size), jnp.float32),
        "ln_ffn_b": 0.1 * jax.random.normal(ks[13], (1, hidden_size), jnp.float32),
        "w1": jax.random.normal(ks[14], (hidden_size, intermediate_size), jnp.float32) * s,
        "b1": jax.random.normal(ks[15], (1, intermediate_size), jnp.float32) * s,
        "w2": jax.random.normal(ks[0], (intermediate_size, hidden_size), jnp.float32) * s,
        "b2": jax.random.normal(ks[1], (1, hidden_size), jnp.float32) * s,
    }


if __name__ == "__main__":
    # Small shapes consistent with the module's forward (lane-friendly H/IH):
    #   hidden_states: (B, N, hidden_size), x: (B, M, image_hidden_size)
    B, N, M = 2, 8, 16
    hidden_size, image_hidden_size, num_heads = 128, 256, 4
    intermediate_size = hidden_size * 4

    key = jax.random.PRNGKey(0)
    k_hs, k_x, k_p = jax.random.split(key, 3)
    hidden_states = jax.random.normal(k_hs, (B, N, hidden_size), jnp.float32)
    x = jax.random.normal(k_x, (B, M, image_hidden_size), jnp.float32)
    params = make_params(k_p, hidden_size, image_hidden_size, intermediate_size)

    out = jax.block_until_ready(resampler_block(hidden_states, x, params, num_heads))
    ref = jax.block_until_ready(resampler_block_ref(hidden_states, x, params, num_heads))
    np.testing.assert_allclose(np.asarray(out), np.asarray(ref), rtol=1e-2, atol=1e-2)

    print("KERNEL_OK")
</pallas_src>

<mosaic_0001>
module attributes {stable_mosaic.version = 11 : i64} {
  func.func @resampler_block_kernel(%arg0: i32, %arg1: memref<1x8x128xbf16, #tpu.memory_space<vmem>>, %arg2: memref<1x16x256xbf16, #tpu.memory_space<vmem>>, %arg3: memref<128x128xbf16, #tpu.memory_space<vmem>>, %arg4: memref<1x128xf32, #tpu.memory_space<vmem>>, %arg5: memref<256x256xbf16, #tpu.memory_space<vmem>>, %arg6: memref<1x256xf32, #tpu.memory_space<vmem>>, %arg7: memref<128x128xbf16, #tpu.memory_space<vmem>>, %arg8: memref<1x128xf32, #tpu.memory_space<vmem>>, %arg9: memref<1x256xf32, #tpu.memory_space<vmem>>, %arg10: memref<1x256xf32, #tpu.memory_space<vmem>>, %arg11: memref<1x128xf32, #tpu.memory_space<vmem>>, %arg12: memref<1x128xf32, #tpu.memory_space<vmem>>, %arg13: memref<1x128xf32, #tpu.memory_space<vmem>>, %arg14: memref<1x128xf32, #tpu.memory_space<vmem>>, %arg15: memref<128x512xbf16, #tpu.memory_space<vmem>>, %arg16: memref<1x512xf32, #tpu.memory_space<vmem>>, %arg17: memref<512x128xbf16, #tpu.memory_space<vmem>>, %arg18: memref<1x128xf32, #tpu.memory_space<vmem>>, %arg19: memref<1x8x128xf32, #tpu.memory_space<vmem>>) attributes {dimension_semantics = [#tpu.dimension_semantics<parallel>], iteration_bounds = array<i64: 2>, scalar_prefetch = 0 : i64, scratch_operands = 0 : i64, tpu.core_type = #tpu.core_type<tc>, window_params = [{transform_indices = @transform_0, window_bounds = array<i64: 1, 8, 128>}, {transform_indices = @transform_1, window_bounds = array<i64: 1, 16, 256>}, {pipeline_mode = #tpu.pipeline_mode<synchronous>, transform_indices = @transform_2, window_bounds = array<i64: 128, 128>}, {pipeline_mode = #tpu.pipeline_mode<synchronous>, transform_indices = @transform_3, window_bounds = array<i64: 1, 128>}, {pipeline_mode = #tpu.pipeline_mode<synchronous>, transform_indices = @transform_4, window_bounds = array<i64: 256, 256>}, {pipeline_mode = #tpu.pipeline_mode<synchronous>, transform_indices = @transform_5, window_bounds = array<i64: 1, 256>}, {pipeline_mode = #tpu.pipeline_mode<synchronous>, transform_indices = @transform_6, window_bounds = array<i64: 128, 128>}, {pipeline_mode = #tpu.pipeline_mode<synchronous>, transform_indices = @transform_7, window_bounds = array<i64: 1, 128>}, {pipeline_mode = #tpu.pipeline_mode<synchronous>, transform_indices = @transform_8, window_bounds = array<i64: 1, 256>}, {pipeline_mode = #tpu.pipeline_mode<synchronous>, transform_indices = @transform_9, window_bounds = array<i64: 1, 256>}, {pipeline_mode = #tpu.pipeline_mode<synchronous>, transform_indices = @transform_10, window_bounds = array<i64: 1, 128>}, {pipeline_mode = #tpu.pipeline_mode<synchronous>, transform_indices = @transform_11, window_bounds = array<i64: 1, 128>}, {pipeline_mode = #tpu.pipeline_mode<synchronous>, transform_indices = @transform_12, window_bounds = array<i64: 1, 128>}, {pipeline_mode = #tpu.pipeline_mode<synchronous>, transform_indices = @transform_13, window_bounds = array<i64: 1, 128>}, {pipeline_mode = #tpu.pipeline_mode<synchronous>, transform_indices = @transform_14, window_bounds = array<i64: 128, 512>}, {pipeline_mode = #tpu.pipeline_mode<synchronous>, transform_indices = @transform_15, window_bounds = array<i64: 1, 512>}, {pipeline_mode = #tpu.pipeline_mode<synchronous>, transform_indices = @transform_16, window_bounds = array<i64: 512, 128>}, {pipeline_mode = #tpu.pipeline_mode<synchronous>, transform_indices = @transform_17, window_bounds = array<i64: 1, 128>}, {transform_indices = @transform_18, window_bounds = array<i64: 1, 8, 128>}]} {
    %c0 = arith.constant 0 : index
    %c0_0 = arith.constant 0 : index
    %c0_1 = arith.constant 0 : index
    %0 = vector.load %arg1[%c0, %c0_0, %c0_1] : memref<1x8x128xbf16, #tpu.memory_space<vmem>>, vector<1x8x128xbf16>
    %1 = vector.shape_cast %0 : vector<1x8x128xbf16> to vector<8x128xbf16>
    %2 = arith.extf %1 : vector<8x128xbf16> to vector<8x128xf32>
    %c0_2 = arith.constant 0 : index
    %c0_3 = arith.constant 0 : index
    %c0_4 = arith.constant 0 : index
    %3 = vector.load %arg2[%c0_2, %c0_3, %c0_4] : memref<1x16x256xbf16, #tpu.memory_space<vmem>>, vector<1x16x256xbf16>
    %4 = vector.shape_cast %3 : vector<1x16x256xbf16> to vector<16x256xbf16>
    %5 = arith.extf %4 : vector<16x256xbf16> to vector<16x256xf32>
    %c0_5 = arith.constant 0 : index
    %c0_6 = arith.constant 0 : index
    %6 = vector.load %arg11[%c0_5, %c0_6] : memref<1x128xf32, #tpu.memory_space<vmem>>, vector<1x128xf32>
    %c0_7 = arith.constant 0 : index
    %c0_8 = arith.constant 0 : index
    %7 = vector.load %arg12[%c0_7, %c0_8] : memref<1x128xf32, #tpu.memory_space<vmem>>, vector<1x128xf32>
    %cst = arith.constant dense<0.000000e+00> : vector<8xf32>
    %8 = vector.multi_reduction <add>, %2, %cst [1] : vector<8x128xf32> to vector<8xf32>
    %9 = vector.shape_cast %8 : vector<8xf32> to vector<8x1xf32>
    %cst_9 = arith.constant 1.280000e+02 : f32
    %10 = vector.broadcast %cst_9 : f32 to vector<8x1xf32>
    %11 = arith.divf %9, %10 : vector<8x1xf32>
    %12 = vector.broadcast %11 : vector<8x1xf32> to vector<8x128xf32>
    %13 = arith.subf %2, %12 : vector<8x128xf32>
    %14 = arith.mulf %13, %13 : vector<8x128xf32>
    %cst_10 = arith.constant dense<0.000000e+00> : vector<8xf32>
    %15 = vector.multi_reduction <add>, %14, %cst_10 [1] : vector<8x128xf32> to vector<8xf32>
    %16 = vector.shape_cast %15 : vector<8xf32> to vector<8x1xf32>
    %cst_11 = arith.constant 1.280000e+02 : f32
    %17 = vector.broadcast %cst_11 : f32 to vector<8x1xf32>
    %18 = arith.divf %16, %17 : vector<8x1xf32>
    %19 = vector.broadcast %11 : vector<8x1xf32> to vector<8x128xf32>
    %20 = arith.subf %2, %19 : vector<8x128xf32>
    %cst_12 = arith.constant 9.99999974E-6 : f32
    %21 = vector.broadcast %cst_12 : f32 to vector<8x1xf32>
    %22 = arith.addf %18, %21 : vector<8x1xf32>
    %23 = math.rsqrt %22 : vector<8x1xf32>
    %24 = vector.broadcast %23 : vector<8x1xf32> to vector<8x128xf32>
    %25 = arith.mulf %20, %24 : vector<8x128xf32>
    %26 = vector.broadcast %6 : vector<1x128xf32> to vector<8x128xf32>
    %27 = arith.mulf %25, %26 : vector<8x128xf32>
    %28 = vector.broadcast %7 : vector<1x128xf32> to vector<8x128xf32>
    %29 = arith.addf %27, %28 : vector<8x128xf32>
    %30 = arith.truncf %29 : vector<8x128xf32> to vector<8x128xbf16>
    %c0_13 = arith.constant 0 : index
    %c0_14 = arith.constant 0 : index
    %31 = vector.load %arg9[%c0_13, %c0_14] : memref<1x256xf32, #tpu.memory_space<vmem>>, vector<1x256xf32>
    %c0_15 = arith.constant 0 : index
    %c0_16 = arith.constant 0 : index
    %32 = vector.load %arg10[%c0_15, %c0_16] : memref<1x256xf32, #tpu.memory_space<vmem>>, vector<1x256xf32>
    %cst_17 = arith.constant dense<0.000000e+00> : vector<16xf32>
    %33 = vector.multi_reduction <add>, %5, %cst_17 [1] : vector<16x256xf32> to vector<16xf32>
    %34 = vector.shape_cast %33 : vector<16xf32> to vector<16x1xf32>
    %cst_18 = arith.constant 2.560000e+02 : f32
    %35 = vector.broadcast %cst_18 : f32 to vector<16x1xf32>
    %36 = arith.divf %34, %35 : vector<16x1xf32>
    %37 = vector.broadcast %36 : vector<16x1xf32> to vector<16x256xf32>
    %38 = arith.subf %5, %37 : vector<16x256xf32>
    %39 = arith.mulf %38, %38 : vector<16x256xf32>
    %cst_19 = arith.constant dense<0.000000e+00> : vector<16xf32>
    %40 = vector.multi_reduction <add>, %39, %cst_19 [1] : vector<16x256xf32> to vector<16xf32>
    %41 = vector.shape_cast %40 : vector<16xf32> to vector<16x1xf32>
    %cst_20 = arith.constant 2.560000e+02 : f32
    %42 = vector.broadcast %cst_20 : f32 to vector<16x1xf32>
    %43 = arith.divf %41, %42 : vector<16x1xf32>
    %44 = vector.broadcast %36 : vector<16x1xf32> to vector<16x256xf32>
    %45 = arith.subf %5, %44 : vector<16x256xf32>
    %cst_21 = arith.constant 9.99999974E-6 : f32
    %46 = vector.broadcast %cst_21 : f32 to vector<16x1xf32>
    %47 = arith.addf %43, %46 : vector<16x1xf32>
    %48 = math.rsqrt %47 : vector<16x1xf32>
    %49 = vector.broadcast %48 : vector<16x1xf32> to vector<16x256xf32>
    %50 = arith.mulf %45, %49 : vector<16x256xf32>
    %51 = vector.broadcast %31 : vector<1x256xf32> to vector<16x256xf32>
    %52 = arith.mulf %50, %51 : vector<16x256xf32>
    %53 = vector.broadcast %32 : vector<1x256xf32> to vector<16x256xf32>
    %54 = arith.addf %52, %53 : vector<16x256xf32>
    %55 = arith.truncf %54 : vector<16x256xf32> to vector<16x256xbf16>
    %c0_22 = arith.constant 0 : index
    %c0_23 = arith.constant 0 : index
    %56 = vector.load %arg3[%c0_22, %c0_23] : memref<128x128xbf16, #tpu.memory_space<vmem>>, vector<128x128xbf16>
    %cst_24 = arith.constant dense<0.000000e+00> : vector<8x128xf32>
    %57 = tpu.matmul %30, %56, %cst_24 {dimension_numbers = #tpu.dot_dimension_numbers<[1], [0], [0], [1], [0, 0, 1, 1], [], []>} : vector<8x128xbf16>, vector<128x128xbf16>, vector<8x128xf32> -> vector<8x128xf32>
    %c0_25 = arith.constant 0 : index
    %c0_26 = arith.constant 0 : index
    %58 = vector.load %arg4[%c0_25, %c0_26] : memref<1x128xf32, #tpu.memory_space<vmem>>, vector<1x128xf32>
    %59 = vector.broadcast %58 : vector<1x128xf32> to vector<8x128xf32>
    %60 = arith.addf %57, %59 : vector<8x128xf32>
    %c0_27 = arith.constant 0 : index
    %c0_28 = arith.constant 0 : index
    %61 = vector.load %arg5[%c0_27, %c0_28] : memref<256x256xbf16, #tpu.memory_space<vmem>>, vector<256x256xbf16>
    %cst_29 = arith.constant dense<0.000000e+00> : vector<16x256xf32>
    %62 = tpu.matmul %55, %61, %cst_29 {dimension_numbers = #tpu.dot_dimension_numbers<[1], [0], [0], [1], [0, 0, 1, 1], [], []>} : vector<16x256xbf16>, vector<256x256xbf16>, vector<16x256xf32> -> vector<16x256xf32>
    %c0_30 = arith.constant 0 : index
    %c0_31 = arith.constant 0 : index
    %63 = vector.load %arg6[%c0_30, %c0_31] : memref<1x256xf32, #tpu.memory_space<vmem>>, vector<1x256xf32>
    %64 = vector.broadcast %63 : vector<1x256xf32> to vector<16x256xf32>
    %65 = arith.addf %62, %64 : vector<16x256xf32>
    %cst_32 = arith.constant 0.176776692 : f32
    %66 = vector.broadcast %cst_32 : f32 to vector<8x128xf32>
    %67 = arith.mulf %60, %66 : vector<8x128xf32>
    %68 = arith.truncf %67 : vector<8x128xf32> to vector<8x128xbf16>
    %69 = vector.extract_strided_slice %65 {offsets = [0, 0], sizes = [16, 128], strides = [1, 1]} : vector<16x256xf32> to vector<16x128xf32>
    %70 = arith.truncf %69 : vector<16x128xf32> to vector<16x128xbf16>
    %71 = vector.extract_strided_slice %65 {offsets = [0, 128], sizes = [16, 128], strides = [1, 1]} : vector<16x256xf32> to vector<16x128xf32>
    %72 = arith.truncf %71 : vector<16x128xf32> to vector<16x128xbf16>
    %73 = vector.extract_strided_slice %68 {offsets = [0, 0], sizes = [8, 32], strides = [1, 1]} : vector<8x128xbf16> to vector<8x32xbf16>
    %74 = vector.extract_strided_slice %68 {offsets = [0, 32], sizes = [8, 32], strides = [1, 1]} : vector<8x128xbf16> to vector<8x32xbf16>
    %75 = vector.extract_strided_slice %68 {offsets = [0, 64], sizes = [8, 32], strides = [1, 1]} : vector<8x128xbf16> to vector<8x32xbf16>
    %76 = vector.extract_strided_slice %68 {offsets = [0, 96], sizes = [8, 32], strides = [1, 1]} : vector<8x128xbf16> to vector<8x32xbf16>
    %77 = vector.shape_cast %73 : vector<8x32xbf16> to vector<1x8x32xbf16>
    %78 = vector.shape_cast %74 : vector<8x32xbf16> to vector<1x8x32xbf16>
    %79 = vector.shape_cast %75 : vector<8x32xbf16> to vector<1x8x32xbf16>
    %80 = vector.shape_cast %76 : vector<8x32xbf16> to vector<1x8x32xbf16>
    %81 = tpu.concatenate %77, %78, %79, %80 in 0 : vector<1x8x32xbf16>, vector<1x8x32xbf16>, vector<1x8x32xbf16>, vector<1x8x32xbf16> -> vector<4x8x32xbf16>
    %82 = vector.extract_strided_slice %70 {offsets = [0, 0], sizes = [16, 32], strides = [1, 1]} : vector<16x128xbf16> to vector<16x32xbf16>
    %83 = vector.extract_strided_slice %70 {offsets = [0, 32], sizes = [16, 32], strides = [1, 1]} : vector<16x128xbf16> to vector<16x32xbf16>
    %84 = vector.extract_strided_slice %70 {offsets = [0, 64], sizes = [16, 32], strides = [1, 1]} : vector<16x128xbf16> to vector<16x32xbf16>
    %85 = vector.extract_strided_slice %70 {offsets = [0, 96], sizes = [16, 32], strides = [1, 1]} : vector<16x128xbf16> to vector<16x32xbf16>
    %86 = vector.shape_cast %82 : vector<16x32xbf16> to vector<1x16x32xbf16>
    %87 = vector.shape_cast %83 : vector<16x32xbf16> to vector<1x16x32xbf16>
    %88 = vector.shape_cast %84 : vector<16x32xbf16> to vector<1x16x32xbf16>
    %89 = vector.shape_cast %85 : vector<16x32xbf16> to vector<1x16x32xbf16>
    %90 = tpu.concatenate %86, %87, %88, %89 in 0 : vector<1x16x32xbf16>, vector<1x16x32xbf16>, vector<1x16x32xbf16>, vector<1x16x32xbf16> -> vector<4x16x32xbf16>
    %91 = vector.extract_strided_slice %72 {offsets = [0, 0], sizes = [16, 32], strides = [1, 1]} : vector<16x128xbf16> to vector<16x32xbf16>
    %92 = vector.extract_strided_slice %72 {offsets = [0, 32], sizes = [16, 32], strides = [1, 1]} : vector<16x128xbf16> to vector<16x32xbf16>
    %93 = vector.extract_strided_slice %72 {offsets = [0, 64], sizes = [16, 32], strides = [1, 1]} : vector<16x128xbf16> to vector<16x32xbf16>
    %94 = vector.extract_strided_slice %72 {offsets = [0, 96], sizes = [16, 32], strides = [1, 1]} : vector<16x128xbf16> to vector<16x32xbf16>
    %95 = vector.shape_cast %91 : vector<16x32xbf16> to vector<1x16x32xbf16>
    %96 = vector.shape_cast %92 : vector<16x32xbf16> to vector<1x16x32xbf16>
    %97 = vector.shape_cast %93 : vector<16x32xbf16> to vector<1x16x32xbf16>
    %98 = vector.shape_cast %94 : vector<16x32xbf16> to vector<1x16x32xbf16>
    %99 = tpu.concatenate %95, %96, %97, %98 in 0 : vector<1x16x32xbf16>, vector<1x16x32xbf16>, vector<1x16x32xbf16>, vector<1x16x32xbf16> -> vector<4x16x32xbf16>
    "tpu.trace_start"() <{level = 10 : i32, message = "gnd,gmd->gnm"}> : () -> ()
    %cst_33 = arith.constant dense<0.000000e+00> : vector<4x8x16xf32>
    %100 = tpu.matmul %81, %90, %cst_33 {dimension_numbers = #tpu.dot_dimension_numbers<[2], [2], [1], [1], [0, 0, 0, 1, 1, 1], [0], [0]>} : vector<4x8x32xbf16>, vector<4x16x32xbf16>, vector<4x8x16xf32> -> vector<4x8x16xf32>
    "tpu.trace_stop"() : () -> ()
    %cst_34 = arith.constant dense<0xFF800000> : vector<4x8xf32>
    %101 = vector.multi_reduction <maximumf>, %100, %cst_34 [2] : vector<4x8x16xf32> to vector<4x8xf32>
    %102 = vector.shape_cast %101 : vector<4x8xf32> to vector<4x8x1xf32>
    %103 = vector.broadcast %102 : vector<4x8x1xf32> to vector<4x8x16xf32>
    %104 = arith.subf %100, %103 : vector<4x8x16xf32>
    %105 = math.exp %104 : vector<4x8x16xf32>
    %cst_35 = arith.constant dense<0.000000e+00> : vector<4x8xf32>
    %106 = vector.multi_reduction <add>, %105, %cst_35 [2] : vector<4x8x16xf32> to vector<4x8xf32>
    %107 = vector.shape_cast %106 : vector<4x8xf32> to vector<4x8x1xf32>
    %108 = tpu.reciprocal %107 {approx = true} : vector<4x8x1xf32> -> vector<4x8x1xf32>
    %109 = arith.truncf %105 : vector<4x8x16xf32> to vector<4x8x16xbf16>
    "tpu.trace_start"() <{level = 10 : i32, message = "gnm,gmd->gnd"}> : () -> ()
    %cst_36 = arith.constant dense<0.000000e+00> : vector<4x8x32xf32>
    %110 = tpu.matmul %109, %99, %cst_36 {dimension_numbers = #tpu.dot_dimension_numbers<[2], [1], [1], [2], [0, 0, 0, 1, 1, 2], [0], [0]>} : vector<4x8x16xbf16>, vector<4x16x32xbf16>, vector<4x8x32xf32> -> vector<4x8x32xf32>
    "tpu.trace_stop"() : () -> ()
    %111 = vector.broadcast %108 : vector<4x8x1xf32> to vector<4x8x32xf32>
    %112 = arith.mulf %110, %111 : vector<4x8x32xf32>
    %113 = vector.extract_strided_slice %112 {offsets = [0, 0, 0], sizes = [1, 8, 32], strides = [1, 1, 1]} : vector<4x8x32xf32> to vector<1x8x32xf32>
    %114 = vector.shape_cast %113 : vector<1x8x32xf32> to vector<8x32xf32>
    %115 = vector.extract_strided_slice %112 {offsets = [1, 0, 0], sizes = [1, 8, 32], strides = [1, 1, 1]} : vector<4x8x32xf32> to vector<1x8x32xf32>
    %116 = vector.shape_cast %115 : vector<1x8x32xf32> to vector<8x32xf32>
    %117 = vector.extract_strided_slice %112 {offsets = [2, 0, 0], sizes = [1, 8, 32], strides = [1, 1, 1]} : vector<4x8x32xf32> to vector<1x8x32xf32>
    %118 = vector.shape_cast %117 : vector<1x8x32xf32> to vector<8x32xf32>
    %119 = vector.extract_strided_slice %112 {offsets = [3, 0, 0], sizes = [1, 8, 32], strides = [1, 1, 1]} : vector<4x8x32xf32> to vector<1x8x32xf32>
    %120 = vector.shape_cast %119 : vector<1x8x32xf32> to vector<8x32xf32>
    %121 = tpu.concatenate %114, %116, %118, %120 in 1 : vector<8x32xf32>, vector<8x32xf32>, vector<8x32xf32>, vector<8x32xf32> -> vector<8x128xf32>
    %122 = arith.truncf %121 : vector<8x128xf32> to vector<8x128xbf16>
    %c0_37 = arith.constant 0 : index
    %c0_38 = arith.constant 0 : index
    %123 = vector.load %arg7[%c0_37, %c0_38] : memref<128x128xbf16, #tpu.memory_space<vmem>>, vector<128x128xbf16>
    %cst_39 = arith.constant dense<0.000000e+00> : vector<8x128xf32>
    %124 = tpu.matmul %122, %123, %cst_39 {dimension_numbers = #tpu.dot_dimension_numbers<[1], [0], [0], [1], [0, 0, 1, 1], [], []>} : vector<8x128xbf16>, vector<128x128xbf16>, vector<8x128xf32> -> vector<8x128xf32>
    %c0_40 = arith.constant 0 : index
    %c0_41 = arith.constant 0 : index
    %125 = vector.load %arg8[%c0_40, %c0_41] : memref<1x128xf32, #tpu.memory_space<vmem>>, vector<1x128xf32>
    %126 = vector.broadcast %125 : vector<1x128xf32> to vector<8x128xf32>
    %127 = arith.addf %124, %126 : vector<8x128xf32>
    %128 = arith.addf %127, %2 : vector<8x128xf32>
    %c0_42 = arith.constant 0 : index
    %c0_43 = arith.constant 0 : index
    %129 = vector.load %arg13[%c0_42, %c0_43] : memref<1x128xf32, #tpu.memory_space<vmem>>, vector<1x128xf32>
    %c0_44 = arith.constant 0 : index
    %c0_45 = arith.constant 0 : index
    %130 = vector.load %arg14[%c0_44, %c0_45] : memref<1x128xf32, #tpu.memory_space<vmem>>, vector<1x128xf32>
    %cst_46 = arith.constant dense<0.000000e+00> : vector<8xf32>
    %131 = vector.multi_reduction <add>, %128, %cst_46 [1] : vector<8x128xf32> to vector<8xf32>
    %132 = vector.shape_cast %131 : vector<8xf32> to vector<8x1xf32>
    %cst_47 = arith.constant 1.280000e+02 : f32
    %133 = vector.broadcast %cst_47 : f32 to vector<8x1xf32>
    %134 = arith.divf %132, %133 : vector<8x1xf32>
    %135 = vector.broadcast %134 : vector<8x1xf32> to vector<8x128xf32>
    %136 = arith.subf %128, %135 : vector<8x128xf32>
    %137 = arith.mulf %136, %136 : vector<8x128xf32>
    %cst_48 = arith.constant dense<0.000000e+00> : vector<8xf32>
    %138 = vector.multi_reduction <add>, %137, %cst_48 [1] : vector<8x128xf32> to vector<8xf32>
    %139 = vector.shape_cast %138 : vector<8xf32> to vector<8x1xf32>
    %cst_49 = arith.constant 1.280000e+02 : f32
    %140 = vector.broadcast %cst_49 : f32 to vector<8x1xf32>
    %141 = arith.divf %139, %140 : vector<8x1xf32>
    %142 = vector.broadcast %134 : vector<8x1xf32> to vector<8x128xf32>
    %143 = arith.subf %128, %142 : vector<8x128xf32>
    %cst_50 = arith.constant 9.99999974E-6 : f32
    %144 = vector.broadcast %cst_50 : f32 to vector<8x1xf32>
    %145 = arith.addf %141, %144 : vector<8x1xf32>
    %146 = math.rsqrt %145 : vector<8x1xf32>
    %147 = vector.broadcast %146 : vector<8x1xf32> to vector<8x128xf32>
    %148 = arith.mulf %143, %147 : vector<8x128xf32>
    %149 = vector.broadcast %129 : vector<1x128xf32> to vector<8x128xf32>
    %150 = arith.mulf %148, %149 : vector<8x128xf32>
    %151 = vector.broadcast %130 : vector<1x128xf32> to vector<8x128xf32>
    %152 = arith.addf %150, %151 : vector<8x128xf32>
    %153 = arith.truncf %152 : vector<8x128xf32> to vector<8x128xbf16>
    %c0_51 = arith.constant 0 : index
    %c0_52 = arith.constant 0 : index
    %154 = vector.load %arg15[%c0_51, %c0_52] : memref<128x512xbf16, #tpu.memory_space<vmem>>, vector<128x512xbf16>
    %cst_53 = arith.constant dense<0.000000e+00> : vector<8x512xf32>
    %155 = tpu.matmul %153, %154, %cst_53 {dimension_numbers = #tpu.dot_dimension_numbers<[1], [0], [0], [1], [0, 0, 1, 1], [], []>} : vector<8x128xbf16>, vector<128x512xbf16>, vector<8x512xf32> -> vector<8x512xf32>
    %c0_54 = arith.constant 0 : index
    %c0_55 = arith.constant 0 : index
    %156 = vector.load %arg16[%c0_54, %c0_55] : memref<1x512xf32, #tpu.memory_space<vmem>>, vector<1x512xf32>
    %157 = vector.broadcast %156 : vector<1x512xf32> to vector<8x512xf32>
    %158 = arith.addf %155, %157 : vector<8x512xf32>
    %cst_56 = arith.constant 5.000000e-01 : f32
    %159 = vector.broadcast %cst_56 : f32 to vector<8x512xf32>
    %160 = arith.mulf %159, %158 : vector<8x512xf32>
    %cst_57 = arith.constant 0.707106769 : f32
    %161 = vector.broadcast %cst_57 : f32 to vector<8x512xf32>
    %162 = arith.mulf %158, %161 : vector<8x512xf32>
    %cst_58 = arith.constant 0.000000e+00 : f32
    %163 = vector.broadcast %cst_58 : f32 to vector<8x512xf32>
    %164 = arith.cmpf oge, %162, %163 : vector<8x512xf32>
    %cst_59 = arith.constant 1.000000e+00 : f32
    %cst_60 = arith.constant -1.000000e+00 : f32
    %165 = vector.broadcast %cst_59 : f32 to vector<8x512xf32>
    %166 = vector.broadcast %cst_60 : f32 to vector<8x512xf32>
    %167 = arith.select %164, %165, %166 : vector<8x512xi1>, vector<8x512xf32>
    %168 = math.absf %162 : vector<8x512xf32>
    %cst_61 = arith.constant 0.327591091 : f32
    %169 = vector.broadcast %cst_61 : f32 to vector<8x512xf32>
    %170 = arith.mulf %169, %168 : vector<8x512xf32>
    %cst_62 = arith.constant 1.000000e+00 : f32
    %171 = vector.broadcast %cst_62 : f32 to vector<8x512xf32>
    %172 = arith.addf %171, %170 : vector<8x512xf32>
    %173 = tpu.reciprocal %172 {approx = true} : vector<8x512xf32> -> vector<8x512xf32>
    %cst_63 = arith.constant 1.06140542 : f32
    %174 = vector.broadcast %cst_63 : f32 to vector<8x512xf32>
    %175 = arith.mulf %174, %173 : vector<8x512xf32>
    %cst_64 = arith.constant -1.45315206 : f32
    %176 = vector.broadcast %cst_64 : f32 to vector<8x512xf32>
    %177 = arith.addf %175, %176 : vector<8x512xf32>
    %178 = arith.mulf %177, %173 : vector<8x512xf32>
    %cst_65 = arith.constant 1.42141378 : f32
    %179 = vector.broadcast %cst_65 : f32 to vector<8x512xf32>
    %180 = arith.addf %178, %179 : vector<8x512xf32>
    %181 = arith.mulf %180, %173 : vector<8x512xf32>
    %cst_66 = arith.constant -0.284496725 : f32
    %182 = vector.broadcast %cst_66 : f32 to vector<8x512xf32>
    %183 = arith.addf %181, %182 : vector<8x512xf32>
    %184 = arith.mulf %183, %173 : vector<8x512xf32>
    %cst_67 = arith.constant 0.254829586 : f32
    %185 = vector.broadcast %cst_67 : f32 to vector<8x512xf32>
    %186 = arith.addf %184, %185 : vector<8x512xf32>
    %187 = arith.mulf %186, %173 : vector<8x512xf32>
    %cst_68 = arith.constant 0.000000e+00 : f32
    %188 = vector.broadcast %cst_68 : f32 to vector<8x512xf32>
    %189 = arith.subf %188, %168 : vector<8x512xf32>
    %190 = arith.mulf %189, %168 : vector<8x512xf32>
    %191 = math.exp %190 : vector<8x512xf32>
    %192 = arith.mulf %187, %191 : vector<8x512xf32>
    %cst_69 = arith.constant 1.000000e+00 : f32
    %193 = vector.broadcast %cst_69 : f32 to vector<8x512xf32>
    %194 = arith.subf %193, %192 : vector<8x512xf32>
    %195 = arith.mulf %167, %194 : vector<8x512xf32>
    %cst_70 = arith.constant 1.000000e+00 : f32
    %196 = vector.broadcast %cst_70 : f32 to vector<8x512xf32>
    %197 = arith.addf %196, %195 : vector<8x512xf32>
    %198 = arith.mulf %160, %197 : vector<8x512xf32>
    %199 = arith.truncf %198 : vector<8x512xf32> to vector<8x512xbf16>
    %c0_71 = arith.constant 0 : index
    %c0_72 = arith.constant 0 : index
    %200 = vector.load %arg17[%c0_71, %c0_72] : memref<512x128xbf16, #tpu.memory_space<vmem>>, vector<512x128xbf16>
    %cst_73 = arith.constant dense<0.000000e+00> : vector<8x128xf32>
    %201 = tpu.matmul %199, %200, %cst_73 {dimension_numbers = #tpu.dot_dimension_numbers<[1], [0], [0], [1], [0, 0, 1, 1], [], []>} : vector<8x512xbf16>, vector<512x128xbf16>, vector<8x128xf32> -> vector<8x128xf32>
    %c0_74 = arith.constant 0 : index
    %c0_75 = arith.constant 0 : index
    %202 = vector.load %arg18[%c0_74, %c0_75] : memref<1x128xf32, #tpu.memory_space<vmem>>, vector<1x128xf32>
    %203 = vector.broadcast %202 : vector<1x128xf32> to vector<8x128xf32>
    %204 = arith.addf %201, %203 : vector<8x128xf32>
    %205 = arith.addf %128, %204 : vector<8x128xf32>
    %206 = vector.shape_cast %205 : vector<8x128xf32> to vector<1x8x128xf32>
    %c0_76 = arith.constant 0 : index
    %c0_77 = arith.constant 0 : index
    %c0_78 = arith.constant 0 : index
    %207 = vector.load %arg19[%c0_76, %c0_77, %c0_78] : memref<1x8x128xf32, #tpu.memory_space<vmem>>, vector<1x8x128xf32>
    tpu.vector_store %arg19[%c0_76, %c0_77, %c0_78], %206 {strides = array<i32>} : memref<1x8x128xf32, #tpu.memory_space<vmem>>, vector<1x8x128xf32>,
    return
  }
  func.func @transform_0(%arg0: i32) -> (i32, i32, i32) {
    %c0_i32 = arith.constant 0 : i32
    %c0_i32_0 = arith.constant 0 : i32
    %c0_i32_1 = arith.constant 0 : i32
    return %arg0, %c0_i32, %c0_i32_0 : i32, i32, i32
  }
  func.func @transform_1(%arg0: i32) -> (i32, i32, i32) {
    %c0_i32 = arith.constant 0 : i32
    %c0_i32_0 = arith.constant 0 : i32
    %c0_i32_1 = arith.constant 0 : i32
    return %arg0, %c0_i32, %c0_i32_0 : i32, i32, i32
  }
  func.func @transform_2(%arg0: i32) -> (i32, i32) {
    %c0_i32 = arith.constant 0 : i32
    %c0_i32_0 = arith.constant 0 : i32
    %c0_i32_1 = arith.constant 0 : i32
    return %c0_i32, %c0_i32_0 : i32, i32
  }
  func.func @transform_3(%arg0: i32) -> (i32, i32) {
    %c0_i32 = arith.constant 0 : i32
    %c0_i32_0 = arith.constant 0 : i32
    %c0_i32_1 = arith.constant 0 : i32
    return %c0_i32, %c0_i32_0 : i32, i32
  }
  func.func @transform_4(%arg0: i32) -> (i32, i32) {
    %c0_i32 = arith.constant 0 : i32
    %c0_i32_0 = arith.constant 0 : i32
    %c0_i32_1 = arith.constant 0 : i32
    return %c0_i32, %c0_i32_0 : i32, i32
  }
  func.func @transform_5(%arg0: i32) -> (i32, i32) {
    %c0_i32 = arith.constant 0 : i32
    %c0_i32_0 = arith.constant 0 : i32
    %c0_i32_1 = arith.constant 0 : i32
    return %c0_i32, %c0_i32_0 : i32, i32
  }
  func.func @transform_6(%arg0: i32) -> (i32, i32) {
    %c0_i32 = arith.constant 0 : i32
    %c0_i32_0 = arith.constant 0 : i32
    %c0_i32_1 = arith.constant 0 : i32
    return %c0_i32, %c0_i32_0 : i32, i32
  }
  func.func @transform_7(%arg0: i32) -> (i32, i32) {
    %c0_i32 = arith.constant 0 : i32
    %c0_i32_0 = arith.constant 0 : i32
    %c0_i32_1 = arith.constant 0 : i32
    return %c0_i32, %c0_i32_0 : i32, i32
  }
  func.func @transform_8(%arg0: i32) -> (i32, i32) {
    %c0_i32 = arith.constant 0 : i32
    %c0_i32_0 = arith.constant 0 : i32
    %c0_i32_1 = arith.constant 0 : i32
    return %c0_i32, %c0_i32_0 : i32, i32
  }
  func.func @transform_9(%arg0: i32) -> (i32, i32) {
    %c0_i32 = arith.constant 0 : i32
    %c0_i32_0 = arith.constant 0 : i32
    %c0_i32_1 = arith.constant 0 : i32
    return %c0_i32, %c0_i32_0 : i32, i32
  }
  func.func @transform_10(%arg0: i32) -> (i32, i32) {
    %c0_i32 = arith.constant 0 : i32
    %c0_i32_0 = arith.constant 0 : i32
    %c0_i32_1 = arith.constant 0 : i32
    return %c0_i32, %c0_i32_0 : i32, i32
  }
  func.func @transform_11(%arg0: i32) -> (i32, i32) {
    %c0_i32 = arith.constant 0 : i32
    %c0_i32_0 = arith.constant 0 : i32
    %c0_i32_1 = arith.constant 0 : i32
    return %c0_i32, %c0_i32_0 : i32, i32
  }
  func.func @transform_12(%arg0: i32) -> (i32, i32) {
    %c0_i32 = arith.constant 0 : i32
    %c0_i32_0 = arith.constant 0 : i32
    %c0_i32_1 = arith.constant 0 : i32
    return %c0_i32, %c0_i32_0 : i32, i32
  }
  func.func @transform_13(%arg0: i32) -> (i32, i32) {
    %c0_i32 = arith.constant 0 : i32
    %c0_i32_0 = arith.constant 0 : i32
    %c0_i32_1 = arith.constant 0 : i32
    return %c0_i32, %c0_i32_0 : i32, i32
  }
  func.func @transform_14(%arg0: i32) -> (i32, i32) {
    %c0_i32 = arith.constant 0 : i32
    %c0_i32_0 = arith.constant 0 : i32
    %c0_i32_1 = arith.constant 0 : i32
    return %c0_i32, %c0_i32_0 : i32, i32
  }
  func.func @transform_15(%arg0: i32) -> (i32, i32) {
    %c0_i32 = arith.constant 0 : i32
    %c0_i32_0 = arith.constant 0 : i32
    %c0_i32_1 = arith.constant 0 : i32
    return %c0_i32, %c0_i32_0 : i32, i32
  }
  func.func @transform_16(%arg0: i32) -> (i32, i32) {
    %c0_i32 = arith.constant 0 : i32
    %c0_i32_0 = arith.constant 0 : i32
    %c0_i32_1 = arith.constant 0 : i32
    return %c0_i32, %c0_i32_0 : i32, i32
  }
  func.func @transform_17(%arg0: i32) -> (i32, i32) {
    %c0_i32 = arith.constant 0 : i32
    %c0_i32_0 = arith.constant 0 : i32
    %c0_i32_1 = arith.constant 0 : i32
    return %c0_i32, %c0_i32_0 : i32, i32
  }
  func.func @transform_18(%arg0: i32) -> (i32, i32, i32) {
    %c0_i32 = arith.constant 0 : i32
    %c0_i32_0 = arith.constant 0 : i32
    %c0_i32_1 = arith.constant 0 : i32
    return %arg0, %c0_i32, %c0_i32_0 : i32, i32, i32
  }
}

</mosaic_0001>

<llo_original>
// kernel: tpu_custom_call.1
$region0: #{tpu_custom_call.1}
  #allocation0 [shape = 'u32[]', space=smem, size = 0x4, offset = 0x4, fixed_abs, tag = 'smem constant byte address 0x4 - core index']
  #allocation1 [shape = 'u32[144,128]{1,0:T(1,128)}', space=vmem, size = 0x12000, scoped, tag = 'internal scratch']
  %s0 = inlined_call_operand.hbm [shape: bf16[2,8,128], index: 0, kind: input, shape index: {}]
  %s1 = inlined_call_operand.hbm [shape: bf16[2,16,256], index: 1, kind: input, shape index: {}]
  %s2 = inlined_call_operand.hbm [shape: bf16[128,128], index: 2, kind: input, shape index: {}]
  %s3 = inlined_call_operand.vmem [shape: f32[1,128], index: 3, kind: input, shape index: {}]
  %s4 = inlined_call_operand.hbm [shape: bf16[256,256], index: 4, kind: input, shape index: {}]
  %s5 = inlined_call_operand.vmem [shape: f32[1,256], index: 5, kind: input, shape index: {}]
  %s6 = inlined_call_operand.hbm [shape: bf16[128,128], index: 6, kind: input, shape index: {}]
  %s7 = inlined_call_operand.vmem [shape: f32[1,128], index: 7, kind: input, shape index: {}]
  %s8 = inlined_call_operand.vmem [shape: f32[1,256], index: 8, kind: input, shape index: {}]
  %s9 = inlined_call_operand.vmem [shape: f32[1,256], index: 9, kind: input, shape index: {}]
  %s10 = inlined_call_operand.vmem [shape: f32[1,128], index: 10, kind: input, shape index: {}]
  %s11 = inlined_call_operand.vmem [shape: f32[1,128], index: 11, kind: input, shape index: {}]
  %s12 = inlined_call_operand.vmem [shape: f32[1,128], index: 12, kind: input, shape index: {}]
  %s13 = inlined_call_operand.vmem [shape: f32[1,128], index: 13, kind: input, shape index: {}]
  %s14 = inlined_call_operand.hbm [shape: bf16[128,512], index: 14, kind: input, shape index: {}]
  %s15 = inlined_call_operand.vmem [shape: f32[1,512], index: 15, kind: input, shape index: {}]
  %s16 = inlined_call_operand.hbm [shape: bf16[512,128], index: 16, kind: input, shape index: {}]
  %s17 = inlined_call_operand.vmem [shape: f32[1,128], index: 17, kind: input, shape index: {}]
  %s18 = inlined_call_operand.hbm [shape: f32[2,8,128], index: 18, kind: output, shape index: {}]
  %s19 = sld [smem:[#allocation0]]
  $region133: #{tpu_custom_call.1} parent=0
    _
  %s21 = ssub.s32 1, %s19
  %s22 = scalar_select 0, %s21, %s19
  $region1: #{tpu_custom_call.1} parent=0
    #allocation2 [shape = 'u8[4096]{0}', space=vmem, size = 0x1000, scoped, tag = 'input window, operand 0']
    #allocation3 [shape = 's32[2]{0}', space=sflag, size = 0x8, scoped, tag = 'scoped memory for tpu_custom_call.1']
    #allocation4 [shape = 's32[2]{0}', space=sflag, size = 0x8, scoped, tag = 'scoped memory for tpu_custom_call.1']
    #allocation5 [shape = 'u8[16384]{0}', space=vmem, size = 0x4000, scoped, tag = 'input window, operand 1']
    #allocation6 [shape = 's32[2]{0}', space=sflag, size = 0x8, scoped, tag = 'scoped memory for tpu_custom_call.1']
    #allocation7 [shape = 'u8[32768]{0}', space=vmem, size = 0x8000, scoped, tag = 'input window, operand 2, single buffered']
    #allocation8 [shape = 'u8[131072]{0}', space=vmem, size = 0x20000, scoped, tag = 'input window, operand 4, single buffered']
    #allocation9 [shape = 's32[1]{0}', space=sflag, size = 0x4, scoped, tag = 'scoped memory for tpu_custom_call.1']
    #allocation10 [shape = 'u8[32768]{0}', space=vmem, size = 0x8000, scoped, tag = 'input window, operand 6, single buffered']
    #allocation11 [shape = 'u8[131072]{0}', space=vmem, size = 0x20000, scoped, tag = 'input window, operand 14, single buffered']
    #allocation12 [shape = 's32[1]{0}', space=sflag, size = 0x4, scoped, tag = 'scoped memory for tpu_custom_call.1']
    #allocation13 [shape = 'u8[131072]{0}', space=vmem, size = 0x20000, scoped, tag = 'input window, operand 16, single buffered']
    #allocation14 [shape = 'u8[8192]{0}', space=vmem, size = 0x2000, scoped, tag = 'output window, operand 0']
    %23 = vsyncpa [#allocation3], 0
    %s24 = scalar_lea.sflag [#allocation3], 1
    %25 = vsyncpa %s24, 0
    %26 = vsyncpa [#allocation6], 0
    %s27 = scalar_lea.sflag [#allocation6], 1
    %28 = vsyncpa %s27, 0
    %29 = vsyncpa [#allocation9], 0
    %30 = vsyncpa [#allocation12], 0
    %31 = vsyncpa [#allocation4], 0
    %s32 = scalar_lea.sflag [#allocation4], 1
    %33 = vsyncpa %s32, 0
    loop: start=0, step=1, limit=4
    $region2: #{tpu_custom_call.1} parent=1 // loop_pre_header
      _
    $region3: #{tpu_custom_call.1} parent=1 // loop_header
      %s35 = sphi 0, %s39
      %p36 = scmp.ge.s32.totalorder %s35, 4
      %s45 = sphi 0, %s47
      %s48 = sphi 0, %s45
      %s49 = sphi 0, %s48
      %s65 = sphi 0, %s49
      %s71 = sphi 0, %s73
      %s74 = sphi 0, %s71
      %s75 = sphi 0, %s74
      %s91 = sphi 0, %s75
      %s95 = sphi 0, %s95
      %s97 = sphi 0, %s95
      %s98 = sphi 0, %s97
      %s112 = sphi 0, %s98
      %s116 = sphi 0, %s116
      %s118 = sphi 0, %s116
      %s119 = sphi 0, %s118
      %s133 = sphi 0, %s119
      %s137 = sphi 0, %s137
      %s139 = sphi 0, %s137
      %s140 = sphi 0, %s139
      %s154 = sphi 0, %s140
      %s158 = sphi 0, %s158
      %s160 = sphi 0, %s158
      %s161 = sphi 0, %s160
      %s175 = sphi 0, %s161
      %s179 = sphi 0, %s179
      %s181 = sphi 0, %s179
      %s182 = sphi 0, %s181
      %s196 = sphi 0, %s182
      %s200 = sphi 0, %s200
      %s202 = sphi 0, %s200
      %s203 = sphi 0, %s202
      %s217 = sphi 0, %s203
      %s221 = sphi 0, %s221
      %s223 = sphi 0, %s221
      %s224 = sphi 0, %s223
      %s238 = sphi 0, %s224
      %s242 = sphi 0, %s242
      %s244 = sphi 0, %s242
      %s245 = sphi 0, %s244
      %s259 = sphi 0, %s245
      %s263 = sphi 0, %s263
      %s265 = sphi 0, %s263
      %s266 = sphi 0, %s265
      %s280 = sphi 0, %s266
      %s284 = sphi 0, %s284
      %s286 = sphi 0, %s284
      %s287 = sphi 0, %s286
      %s301 = sphi 0, %s287
      %s305 = sphi 0, %s305
      %s307 = sphi 0, %s305
      %s308 = sphi 0, %s307
      %s322 = sphi 0, %s308
      %s326 = sphi 0, %s326
      %s328 = sphi 0, %s326
      %s329 = sphi 0, %s328
      %s343 = sphi 0, %s329
      %s347 = sphi 0, %s347
      %s349 = sphi 0, %s347
      %s350 = sphi 0, %s349
      %s364 = sphi 0, %s350
      %s368 = sphi 0, %s368
      %s370 = sphi 0, %s368
      %s371 = sphi 0, %s370
      %s385 = sphi 0, %s371
      %s389 = sphi 0, %s389
      %s391 = sphi 0, %s389
      %s392 = sphi 0, %s391
      %s406 = sphi 0, %s392
      %s410 = sphi 0, %s410
      %s412 = sphi 0, %s410
      %s413 = sphi 0, %s412
      %s427 = sphi 0, %s413
      %s433 = sphi 0, %s435
      %s436 = sphi 0, %s433
      %s437 = sphi 0, %s436
      %s453 = sphi 0, %s437
    $region4: #{tpu_custom_call.1} parent=1 // loop_header_branch
      %38 = sbr.rel (%p36) target = $region8
    $region5: #{tpu_custom_call.1} parent=1 // loop_body
      %s40 = ssub.s32 %s35, 1
      %s41 = ssub.s32 %s35, 2
      %s42 = sadd.s32 %s35, 1
      %s43 = ssub.s32 %s35, %s42
      %p44 = scmp.eq.s32.totalorder %s43, 0
      %s46 = sadd.s32 %s45, 1
      %s47 = scalar_select %p44, %s45, %s46
      %p50 = pneg %p44
      %p51 = scmp.eq.s32.totalorder %s35, 1
      %p52 = por %p50, %p51
      %p53 = scmp.ne.s32.totalorder %s45, %s48
      %p54 = scmp.eq.s32.totalorder %s35, 0
      %p55 = por %p53, %p54
      %p56 = scmp.ne.s32.totalorder %s45, %s48
      %p57 = scmp.eq.s32.totalorder %s40, 1
      %p58 = por %p56, %p57
      %p59 = scmp.ne.s32.totalorder %s48, %s49
      %p60 = scmp.eq.s32.totalorder %s40, 0
      %p61 = por %p59, %p60
      %p62 = scmp.ne.s32.totalorder %s48, %s49
      %p63 = scmp.eq.s32.totalorder %s41, 1
      %p64 = por %p62, %p63
      %p66 = scmp.ne.s32.totalorder %s49, %s65
      %p67 = scmp.eq.s32.totalorder %s41, 0
      %p68 = por %p66, %p67
      %s69 = ssub.s32 %s35, %s42
      %p70 = scmp.eq.s32.totalorder %s69, 0
      %s72 = sadd.s32 %s71, 1
      %s73 = scalar_select %p70, %s71, %s72
      %p76 = pneg %p70
      %p77 = scmp.eq.s32.totalorder %s35, 1
      %p78 = por %p76, %p77
      %p79 = scmp.ne.s32.totalorder %s71, %s74
      %p80 = scmp.eq.s32.totalorder %s35, 0
      %p81 = por %p79, %p80
      %p82 = scmp.ne.s32.totalorder %s71, %s74
      %p83 = scmp.eq.s32.totalorder %s40, 1
      %p84 = por %p82, %p83
      %p85 = scmp.ne.s32.totalorder %s74, %s75
      %p86 = scmp.eq.s32.totalorder %s40, 0
      %p87 = por %p85, %p86
      %p88 = scmp.ne.s32.totalorder %s74, %s75
      %p89 = scmp.eq.s32.totalorder %s41, 1
      %p90 = por %p88, %p89
      %p92 = scmp.ne.s32.totalorder %s75, %s91
      %p93 = scmp.eq.s32.totalorder %s41, 0
      %p94 = por %p92, %p93
      %s96 = sadd.s32 %s95, 1
      %p99 = scmp.eq.s32.totalorder %s35, 1
      %p100 = scmp.ne.s32.totalorder %s95, %s97
      %p101 = scmp.eq.s32.totalorder %s35, 0
      %p102 = por %p100, %p101
      %p103 = scmp.ne.s32.totalorder %s95, %s97
      %p104 = scmp.eq.s32.totalorder %s40, 1
      %p105 = por %p103, %p104
      %p106 = scmp.ne.s32.totalorder %s97, %s98
      %p107 = scmp.eq.s32.totalorder %s40, 0
      %p108 = por %p106, %p107
      %p109 = scmp.ne.s32.totalorder %s97, %s98
      %p110 = scmp.eq.s32.totalorder %s41, 1
      %p111 = por %p109, %p110
      %p113 = scmp.ne.s32.totalorder %s98, %s112
      %p114 = scmp.eq.s32.totalorder %s41, 0
      %p115 = por %p113, %p114
      %s117 = sadd.s32 %s116, 1
      %p120 = scmp.eq.s32.totalorder %s35, 1
      %p121 = scmp.ne.s32.totalorder %s116, %s118
      %p122 = scmp.eq.s32.totalorder %s35, 0
      %p123 = por %p121, %p122
      %p124 = scmp.ne.s32.totalorder %s116, %s118
      %p125 = scmp.eq.s32.totalorder %s40, 1
      %p126 = por %p124, %p125
      %p127 = scmp.ne.s32.totalorder %s118, %s119
      %p128 = scmp.eq.s32.totalorder %s40, 0
      %p129 = por %p127, %p128
      %p130 = scmp.ne.s32.totalorder %s118, %s119
      %p131 = scmp.eq.s32.totalorder %s41, 1
      %p132 = por %p130, %p131
      %p134 = scmp.ne.s32.totalorder %s119, %s133
      %p135 = scmp.eq.s32.totalorder %s41, 0
      %p136 = por %p134, %p135
      %s138 = sadd.s32 %s137, 1
      %p141 = scmp.eq.s32.totalorder %s35, 1
      %p142 = scmp.ne.s32.totalorder %s137, %s139
      %p143 = scmp.eq.s32.totalorder %s35, 0
      %p144 = por %p142, %p143
      %p145 = scmp.ne.s32.totalorder %s137, %s139
      %p146 = scmp.eq.s32.totalorder %s40, 1
      %p147 = por %p145, %p146
      %p148 = scmp.ne.s32.totalorder %s139, %s140
      %p149 = scmp.eq.s32.totalorder %s40, 0
      %p150 = por %p148, %p149
      %p151 = scmp.ne.s32.totalorder %s139, %s140
      %p152 = scmp.eq.s32.totalorder %s41, 1
      %p153 = por %p151, %p152
      %p155 = scmp.ne.s32.totalorder %s140, %s154
      %p156 = scmp.eq.s32.totalorder %s41, 0
      %p157 = por %p155, %p156
      %s159 = sadd.s32 %s158, 1
      %p162 = scmp.eq.s32.totalorder %s35, 1
      %p163 = scmp.ne.s32.totalorder %s158, %s160
      %p164 = scmp.eq.s32.totalorder %s35, 0
      %p165 = por %p163, %p164
      %p166 = scmp.ne.s32.totalorder %s158, %s160
      %p167 = scmp.eq.s32.totalorder %s40, 1
      %p168 = por %p166, %p167
      %p169 = scmp.ne.s32.totalorder %s160, %s161
      %p170 = scmp.eq.s32.totalorder %s40, 0
      %p171 = por %p169, %p170
      %p172 = scmp.ne.s32.totalorder %s160, %s161
      %p173 = scmp.eq.s32.totalorder %s41, 1
      %p174 = por %p172, %p173
      %p176 = scmp.ne.s32.totalorder %s161, %s175
      %p177 = scmp.eq.s32.totalorder %s41, 0
      %p178 = por %p176, %p177
      %s180 = sadd.s32 %s179, 1
      %p183 = scmp.eq.s32.totalorder %s35, 1
      %p184 = scmp.ne.s32.totalorder %s179, %s181
      %p185 = scmp.eq.s32.totalorder %s35, 0
      %p186 = por %p184, %p185
      %p187 = scmp.ne.s32.totalorder %s179, %s181
      %p188 = scmp.eq.s32.totalorder %s40, 1
      %p189 = por %p187, %p188
      %p190 = scmp.ne.s32.totalorder %s181, %s182
      %p191 = scmp.eq.s32.totalorder %s40, 0
      %p192 = por %p190, %p191
      %p193 = scmp.ne.s32.totalorder %s181, %s182
      %p194 = scmp.eq.s32.totalorder %s41, 1
      %p195 = por %p193, %p194
      %p197 = scmp.ne.s32.totalorder %s182, %s196
      %p198 = scmp.eq.s32.totalorder %s41, 0
      %p199 = por %p197, %p198
      %s201 = sadd.s32 %s200, 1
      %p204 = scmp.eq.s32.totalorder %s35, 1
      %p205 = scmp.ne.s32.totalorder %s200, %s202
      %p206 = scmp.eq.s32.totalorder %s35, 0
      %p207 = por %p205, %p206
      %p208 = scmp.ne.s32.totalorder %s200, %s202
      %p209 = scmp.eq.s32.totalorder %s40, 1
      %p210 = por %p208, %p209
      %p211 = scmp.ne.s32.totalorder %s202, %s203
      %p212 = scmp.eq.s32.totalorder %s40, 0
      %p213 = por %p211, %p212
      %p214 = scmp.ne.s32.totalorder %s202, %s203
      %p215 = scmp.eq.s32.totalorder %s41, 1
      %p216 = por %p214, %p215
      %p218 = scmp.ne.s32.totalorder %s203, %s217
      %p219 = scmp.eq.s32.totalorder %s41, 0
      %p220 = por %p218, %p219
      %s222 = sadd.s32 %s221, 1
      %p225 = scmp.eq.s32.totalorder %s35, 1
      %p226 = scmp.ne.s32.totalorder %s221, %s223
      %p227 = scmp.eq.s32.totalorder %s35, 0
      %p228 = por %p226, %p227
      %p229 = scmp.ne.s32.totalorder %s221, %s223
      %p230 = scmp.eq.s32.totalorder %s40, 1
      %p231 = por %p229, %p230
      %p232 = scmp.ne.s32.totalorder %s223, %s224
      %p233 = scmp.eq.s32.totalorder %s40, 0
      %p234 = por %p232, %p233
      %p235 = scmp.ne.s32.totalorder %s223, %s224
      %p236 = scmp.eq.s32.totalorder %s41, 1
      %p237 = por %p235, %p236
      %p239 = scmp.ne.s32.totalorder %s224, %s238
      %p240 = scmp.eq.s32.totalorder %s41, 0
      %p241 = por %p239, %p240
      %s243 = sadd.s32 %s242, 1
      %p246 = scmp.eq.s32.totalorder %s35, 1
      %p247 = scmp.ne.s32.totalorder %s242, %s244
      %p248 = scmp.eq.s32.totalorder %s35, 0
      %p249 = por %p247, %p248
      %p250 = scmp.ne.s32.totalorder %s242, %s244
      %p251 = scmp.eq.s32.totalorder %s40, 1
      %p252 = por %p250, %p251
      %p253 = scmp.ne.s32.totalorder %s244, %s245
      %p254 = scmp.eq.s32.totalorder %s40, 0
      %p255 = por %p253, %p254
      %p256 = scmp.ne.s32.totalorder %s244, %s245
      %p257 = scmp.eq.s32.totalorder %s41, 1
      %p258 = por %p256, %p257
      %p260 = scmp.ne.s32.totalorder %s245, %s259
      %p261 = scmp.eq.s32.totalorder %s41, 0
      %p262 = por %p260, %p261
      %s264 = sadd.s32 %s263, 1
      %p267 = scmp.eq.s32.totalorder %s35, 1
      %p268 = scmp.ne.s32.totalorder %s263, %s265
      %p269 = scmp.eq.s32.totalorder %s35, 0
      %p270 = por %p268, %p269
      %p271 = scmp.ne.s32.totalorder %s263, %s265
      %p272 = scmp.eq.s32.totalorder %s40, 1
      %p273 = por %p271, %p272
      %p274 = scmp.ne.s32.totalorder %s265, %s266
      %p275 = scmp.eq.s32.totalorder %s40, 0
      %p276 = por %p274, %p275
      %p277 = scmp.ne.s32.totalorder %s265, %s266
      %p278 = scmp.eq.s32.totalorder %s41, 1
      %p279 = por %p277, %p278
      %p281 = scmp.ne.s32.totalorder %s266, %s280
      %p282 = scmp.eq.s32.totalorder %s41, 0
      %p283 = por %p281, %p282
      %s285 = sadd.s32 %s284, 1
      %p288 = scmp.eq.s32.totalorder %s35, 1
      %p289 = scmp.ne.s32.totalorder %s284, %s286
      %p290 = scmp.eq.s32.totalorder %s35, 0
      %p291 = por %p289, %p290
      %p292 = scmp.ne.s32.totalorder %s284, %s286
      %p293 = scmp.eq.s32.totalorder %s40, 1
      %p294 = por %p292, %p293
      %p295 = scmp.ne.s32.totalorder %s286, %s287
      %p296 = scmp.eq.s32.totalorder %s40, 0
      %p297 = por %p295, %p296
      %p298 = scmp.ne.s32.totalorder %s286, %s287
      %p299 = scmp.eq.s32.totalorder %s41, 1
      %p300 = por %p298, %p299
      %p302 = scmp.ne.s32.totalorder %s287, %s301
      %p303 = scmp.eq.s32.totalorder %s41, 0
      %p304 = por %p302, %p303
      %s306 = sadd.s32 %s305, 1
      %p309 = scmp.eq.s32.totalorder %s35, 1
      %p310 = scmp.ne.s32.totalorder %s305, %s307
      %p311 = scmp.eq.s32.totalorder %s35, 0
      %p312 = por %p310, %p311
      %p313 = scmp.ne.s32.totalorder %s305, %s307
      %p314 = scmp.eq.s32.totalorder %s40, 1
      %p315 = por %p313, %p314
      %p316 = scmp.ne.s32.totalorder %s307, %s308
      %p317 = scmp.eq.s32.totalorder %s40, 0
      %p318 = por %p316, %p317
      %p319 = scmp.ne.s32.totalorder %s307, %s308
      %p320 = scmp.eq.s32.totalorder %s41, 1
      %p321 = por %p319, %p320
      %p323 = scmp.ne.s32.totalorder %s308, %s322
      %p324 = scmp.eq.s32.totalorder %s41, 0
      %p325 = por %p323, %p324
      %s327 = sadd.s32 %s326, 1
      %p330 = scmp.eq.s32.totalorder %s35, 1
      %p331 = scmp.ne.s32.totalorder %s326, %s328
      %p332 = scmp.eq.s32.totalorder %s35, 0
      %p333 = por %p331, %p332
      %p334 = scmp.ne.s32.totalorder %s326, %s328
      %p335 = scmp.eq.s32.totalorder %s40, 1
      %p336 = por %p334, %p335
      %p337 = scmp.ne.s32.totalorder %s328, %s329
      %p338 = scmp.eq.s32.totalorder %s40, 0
      %p339 = por %p337, %p338
      %p340 = scmp.ne.s32.totalorder %s328, %s329
      %p341 = scmp.eq.s32.totalorder %s41, 1
      %p342 = por %p340, %p341
      %p344 = scmp.ne.s32.totalorder %s329, %s343
      %p345 = scmp.eq.s32.totalorder %s41, 0
      %p346 = por %p344, %p345
      %s348 = sadd.s32 %s347, 1
      %p351 = scmp.eq.s32.totalorder %s35, 1
      %p352 = scmp.ne.s32.totalorder %s347, %s349
      %p353 = scmp.eq.s32.totalorder %s35, 0
      %p354 = por %p352, %p353
      %p355 = scmp.ne.s32.totalorder %s347, %s349
      %p356 = scmp.eq.s32.totalorder %s40, 1
      %p357 = por %p355, %p356
      %p358 = scmp.ne.s32.totalorder %s349, %s350
      %p359 = scmp.eq.s32.totalorder %s40, 0
      %p360 = por %p358, %p359
      %p361 = scmp.ne.s32.totalorder %s349, %s350
      %p362 = scmp.eq.s32.totalorder %s41, 1
      %p363 = por %p361, %p362
      %p365 = scmp.ne.s32.totalorder %s350, %s364
      %p366 = scmp.eq.s32.totalorder %s41, 0
      %p367 = por %p365, %p366
      %s369 = sadd.s32 %s368, 1
      %p372 = scmp.eq.s32.totalorder %s35, 1
      %p373 = scmp.ne.s32.totalorder %s368, %s370
      %p374 = scmp.eq.s32.totalorder %s35, 0
      %p375 = por %p373, %p374
      %p376 = scmp.ne.s32.totalorder %s368, %s370
      %p377 = scmp.eq.s32.totalorder %s40, 1
      %p378 = por %p376, %p377
      %p379 = scmp.ne.s32.totalorder %s370, %s371
      %p380 = scmp.eq.s32.totalorder %s40, 0
      %p381 = por %p379, %p380
      %p382 = scmp.ne.s32.totalorder %s370, %s371
      %p383 = scmp.eq.s32.totalorder %s41, 1
      %p384 = por %p382, %p383
      %p386 = scmp.ne.s32.totalorder %s371, %s385
      %p387 = scmp.eq.s32.totalorder %s41, 0
      %p388 = por %p386, %p387
      %s390 = sadd.s32 %s389, 1
      %p393 = scmp.eq.s32.totalorder %s35, 1
      %p394 = scmp.ne.s32.totalorder %s389, %s391
      %p395 = scmp.eq.s32.totalorder %s35, 0
      %p396 = por %p394, %p395
      %p397 = scmp.ne.s32.totalorder %s389, %s391
      %p398 = scmp.eq.s32.totalorder %s40, 1
      %p399 = por %p397, %p398
      %p400 = scmp.ne.s32.totalorder %s391, %s392
      %p401 = scmp.eq.s32.totalorder %s40, 0
      %p402 = por %p400, %p401
      %p403 = scmp.ne.s32.totalorder %s391, %s392
      %p404 = scmp.eq.s32.totalorder %s41, 1
      %p405 = por %p403, %p404
      %p407 = scmp.ne.s32.totalorder %s392, %s406
      %p408 = scmp.eq.s32.totalorder %s41, 0
      %p409 = por %p407, %p408
      %s411 = sadd.s32 %s410, 1
      %p414 = scmp.eq.s32.totalorder %s35, 1
      %p415 = scmp.ne.s32.totalorder %s410, %s412
      %p416 = scmp.eq.s32.totalorder %s35, 0
      %p417 = por %p415, %p416
      %p418 = scmp.ne.s32.totalorder %s410, %s412
      %p419 = scmp.eq.s32.totalorder %s40, 1
      %p420 = por %p418, %p419
      %p421 = scmp.ne.s32.totalorder %s412, %s413
      %p422 = scmp.eq.s32.totalorder %s40, 0
      %p423 = por %p421, %p422
      %p424 = scmp.ne.s32.totalorder %s412, %s413
      %p425 = scmp.eq.s32.totalorder %s41, 1
      %p426 = por %p424, %p425
      %p428 = scmp.ne.s32.totalorder %s413, %s427
      %p429 = scmp.eq.s32.totalorder %s41, 0
      %p430 = por %p428, %p429
      %s431 = ssub.s32 %s35, %s42
      %p432 = scmp.eq.s32.totalorder %s431, 0
      %s434 = sadd.s32 %s433, 1
      %s435 = scalar_select %p432, %s433, %s434
      %p438 = pneg %p432
      %p439 = scmp.eq.s32.totalorder %s35, 1
      %p440 = por %p438, %p439
      %p441 = scmp.ne.s32.totalorder %s433, %s436
      %p442 = scmp.eq.s32.totalorder %s35, 0
      %p443 = por %p441, %p442
      %p444 = scmp.ne.s32.totalorder %s433, %s436
      %p445 = scmp.eq.s32.totalorder %s40, 1
      %p446 = por %p444, %p445
      %p447 = scmp.ne.s32.totalorder %s436, %s437
      %p448 = scmp.eq.s32.totalorder %s40, 0
      %p449 = por %p447, %p448
      %p450 = scmp.ne.s32.totalorder %s436, %s437
      %p451 = scmp.eq.s32.totalorder %s41, 1
      %p452 = por %p450, %p451
      %p454 = scmp.ne.s32.totalorder %s437, %s453
      %p455 = scmp.eq.s32.totalorder %s41, 0
      %p456 = por %p454, %p455
      %p457 = scmp.le.s32.totalorder 1, %s35
      %p458 = scmp.lt.s32.totalorder %s35, 3
      %p459 = pnand %p457, %p458
      %p460 = pneg %p459
      // Predicated region
      $region9: #{tpu_custom_call.1} parent=5 // pred_check
        _
      $region10: #{tpu_custom_call.1} parent=5 // pred_check_branch
        %462 = sbr.rel (%p459) target = $region12
      $region11: #{tpu_custom_call.1} parent=5 // pred_region
        %s463 = ssub.s32 %s35, 1
        // Predicated region
        $region13: #{tpu_custom_call.1} parent=11 // pred_check
          %p464 = pneg %p108
        $region14: #{tpu_custom_call.1} parent=11 // pred_check_branch
          %466 = sbr.rel (%p464) target = $region16
        $region15: #{tpu_custom_call.1} parent=11 // pred_region
          %s468 = ssub.s32 1024, 1024
          %469 = vsyncadd [#allocation6], %s468
          %s470 = sshll.u32 [#allocation7], 4
          %s471 = int_to_ptr.vmem [resolvable:$true] %s470
          %476 = dma.hbm_to_vmem [thread:$0]  %s2, 1024, %s471, [#allocation6], 64, 64, 4
        $region16: #{tpu_custom_call.1} parent=11 // pred_fallthru
          _
        // Predicated region
        $region17: #{tpu_custom_call.1} parent=11 // pred_check
          %p477 = pneg %p129
        $region18: #{tpu_custom_call.1} parent=11 // pred_check_branch
          %479 = sbr.rel (%p477) target = $region20
        $region19: #{tpu_custom_call.1} parent=11 // pred_region
          _
        $region20: #{tpu_custom_call.1} parent=11 // pred_fallthru
          _
        // Predicated region
        $region21: #{tpu_custom_call.1} parent=11 // pred_check
          %p480 = pneg %p150
        $region22: #{tpu_custom_call.1} parent=11 // pred_check_branch
          %482 = sbr.rel (%p480) target = $region24
        $region23: #{tpu_custom_call.1} parent=11 // pred_region
          %s484 = ssub.s32 4096, 4096
          %485 = vsyncadd [#allocation9], %s484
          %s486 = sshll.u32 [#allocation8], 4
          %s487 = int_to_ptr.vmem [resolvable:$true] %s486
          %492 = dma.hbm_to_vmem [thread:$0]  %s4, 4096, %s487, [#allocation9], 128, 128, 8
        $region24: #{tpu_custom_call.1} parent=11 // pred_fallthru
          _
        // Predicated region
        $region25: #{tpu_custom_call.1} parent=11 // pred_check
          %p493 = pneg %p171
        $region26: #{tpu_custom_call.1} parent=11 // pred_check_branch
          %495 = sbr.rel (%p493) target = $region28
        $region27: #{tpu_custom_call.1} parent=11 // pred_region
          _
        $region28: #{tpu_custom_call.1} parent=11 // pred_fallthru
          _
        // Predicated region
        $region29: #{tpu_custom_call.1} parent=11 // pred_check
          %p496 = pneg %p192
        $region30: #{tpu_custom_call.1} parent=11 // pred_check_branch
          %498 = sbr.rel (%p496) target = $region32
        $region31: #{tpu_custom_call.1} parent=11 // pred_region
          %s500 = ssub.s32 1024, 1024
          %501 = vsyncadd [#allocation9], %s500
          %s502 = sshll.u32 [#allocation10], 4
          %s503 = int_to_ptr.vmem [resolvable:$true] %s502
          %508 = dma.hbm_to_vmem [thread:$0]  %s6, 1024, %s503, [#allocation9], 64, 64, 4
        $region32: #{tpu_custom_call.1} parent=11 // pred_fallthru
          _
        // Predicated region
        $region33: #{tpu_custom_call.1} parent=11 // pred_check
          %p509 = pneg %p213
        $region34: #{tpu_custom_call.1} parent=11 // pred_check_branch
          %511 = sbr.rel (%p509) target = $region36
        $region35: #{tpu_custom_call.1} parent=11 // pred_region
          _
        $region36: #{tpu_custom_call.1} parent=11 // pred_fallthru
          _
        // Predicated region
        $region37: #{tpu_custom_call.1} parent=11 // pred_check
          %p512 = pneg %p234
        $region38: #{tpu_custom_call.1} parent=11 // pred_check_branch
          %514 = sbr.rel (%p512) target = $region40
        $region39: #{tpu_custom_call.1} parent=11 // pred_region
          _
        $region40: #{tpu_custom_call.1} parent=11 // pred_fallthru
          _
        // Predicated region
        $region41: #{tpu_custom_call.1} parent=11 // pred_check
          %p515 = pneg %p255
        $region42: #{tpu_custom_call.1} parent=11 // pred_check_branch
          %517 = sbr.rel (%p515) target = $region44
        $region43: #{tpu_custom_call.1} parent=11 // pred_region
          _
        $region44: #{tpu_custom_call.1} parent=11 // pred_fallthru
          _
        // Predicated region
        $region45: #{tpu_custom_call.1} parent=11 // pred_check
          %p518 = pneg %p276
        $region46: #{tpu_custom_call.1} parent=11 // pred_check_branch
          %520 = sbr.rel (%p518) target = $region48
        $region47: #{tpu_custom_call.1} parent=11 // pred_region
          _
        $region48: #{tpu_custom_call.1} parent=11 // pred_fallthru
          _
        // Predicated region
        $region49: #{tpu_custom_call.1} parent=11 // pred_check
          %p521 = pneg %p297
        $region50: #{tpu_custom_call.1} parent=11 // pred_check_branch
          %523 = sbr.rel (%p521) target = $region52
        $region51: #{tpu_custom_call.1} parent=11 // pred_region
          _
        $region52: #{tpu_custom_call.1} parent=11 // pred_fallthru
          _
        // Predicated region
        $region53: #{tpu_custom_call.1} parent=11 // pred_check
          %p524 = pneg %p318
        $region54: #{tpu_custom_call.1} parent=11 // pred_check_branch
          %526 = sbr.rel (%p524) target = $region56
        $region55: #{tpu_custom_call.1} parent=11 // pred_region
          _
        $region56: #{tpu_custom_call.1} parent=11 // pred_fallthru
          _
        // Predicated region
        $region57: #{tpu_custom_call.1} parent=11 // pred_check
          %p527 = pneg %p339
        $region58: #{tpu_custom_call.1} parent=11 // pred_check_branch
          %529 = sbr.rel (%p527) target = $region60
        $region59: #{tpu_custom_call.1} parent=11 // pred_region
          _
        $region60: #{tpu_custom_call.1} parent=11 // pred_fallthru
          _
        // Predicated region
        $region61: #{tpu_custom_call.1} parent=11 // pred_check
          %p530 = pneg %p360
        $region62: #{tpu_custom_call.1} parent=11 // pred_check_branch
          %532 = sbr.rel (%p530) target = $region64
        $region63: #{tpu_custom_call.1} parent=11 // pred_region
          %s534 = ssub.s32 4096, 4096
          %535 = vsyncadd [#allocation12], %s534
          %s536 = sshll.u32 [#allocation11], 4
          %s537 = int_to_ptr.vmem [resolvable:$true] %s536
          %542 = dma.hbm_to_vmem [thread:$0]  %s14, 4096, %s537, [#allocation12], 256, 256, 16
        $region64: #{tpu_custom_call.1} parent=11 // pred_fallthru
          _
        // Predicated region
        $region65: #{tpu_custom_call.1} parent=11 // pred_check
          %p543 = pneg %p381
        $region66: #{tpu_custom_call.1} parent=11 // pred_check_branch
          %545 = sbr.rel (%p543) target = $region68
        $region67: #{tpu_custom_call.1} parent=11 // pred_region
          _
        $region68: #{tpu_custom_call.1} parent=11 // pred_fallthru
          _
        // Predicated region
        $region69: #{tpu_custom_call.1} parent=11 // pred_check
          %p546 = pneg %p402
        $region70: #{tpu_custom_call.1} parent=11 // pred_check_branch
          %548 = sbr.rel (%p546) target = $region72
        $region71: #{tpu_custom_call.1} parent=11 // pred_region
          %s550 = ssub.s32 4096, 4096
          %551 = vsyncadd [#allocation12], %s550
          %s552 = sshll.u32 [#allocation13], 4
          %s553 = int_to_ptr.vmem [resolvable:$true] %s552
          %558 = dma.hbm_to_vmem [thread:$0]  %s16, 4096, %s553, [#allocation12], 64, 64, 4
        $region72: #{tpu_custom_call.1} parent=11 // pred_fallthru
          _
        // Predicated region
        $region73: #{tpu_custom_call.1} parent=11 // pred_check
          %p559 = pneg %p423
        $region74: #{tpu_custom_call.1} parent=11 // pred_check_branch
          %561 = sbr.rel (%p559) target = $region76
        $region75: #{tpu_custom_call.1} parent=11 // pred_region
          _
        $region76: #{tpu_custom_call.1} parent=11 // pred_fallthru
          _
      $region12: #{tpu_custom_call.1} parent=5 // pred_fallthru
        _
      %p562 = scmp.lt.s32.totalorder %s35, 2
      // Predicated region
      $region77: #{tpu_custom_call.1} parent=5 // pred_check
        %p563 = pneg %p562
      $region78: #{tpu_custom_call.1} parent=5 // pred_check_branch
        %565 = sbr.rel (%p563) target = $region80
      $region79: #{tpu_custom_call.1} parent=5 // pred_region
        // Predicated region
        $region81: #{tpu_custom_call.1} parent=79 // pred_check
          %p566 = pneg %p55
        $region82: #{tpu_custom_call.1} parent=79 // pred_check_branch
          %568 = sbr.rel (%p566) target = $region84
        $region83: #{tpu_custom_call.1} parent=79 // pred_region
          %s569 = sand.u32 %s45, 1
          %s570 = scalar_lea.sflag [#allocation3], %s569
          %s571 = sand.u32 %s45, 1
          %s572 = smul.addr %s571, 4
          %s573 = scalar_lea.vmem [#allocation2], %s572
          %s575 = ssub.s32 64, 64
          %576 = vsyncadd %s570, %s575
          %s577 = smul.addr %s35, 64
          %s578 = scalar_lea.hbm %s0, %s577
          %s580 = sshll.u32 %s573, 4
          %s581 = int_to_ptr.vmem [resolvable:$true] %s580
          %583 = dma.hbm_to_vmem [thread:$0]  %s578, 64, %s581, %s570
        $region84: #{tpu_custom_call.1} parent=79 // pred_fallthru
          _
        // Predicated region
        $region85: #{tpu_custom_call.1} parent=79 // pred_check
          %p584 = pneg %p81
        $region86: #{tpu_custom_call.1} parent=79 // pred_check_branch
          %586 = sbr.rel (%p584) target = $region88
        $region87: #{tpu_custom_call.1} parent=79 // pred_region
          %s587 = sand.u32 %s35, 1
          %s588 = scalar_lea.sflag [#allocation6], %s587
          %s589 = sand.u32 %s71, 1
          %s590 = smul.addr %s589, 16
          %s591 = scalar_lea.vmem [#allocation5], %s590
          %s593 = ssub.s32 256, 256
          %594 = vsyncadd %s588, %s593
          %s595 = smul.addr %s35, 4
          %s596 = smul.addr %s595, 64
          %s597 = scalar_lea.hbm %s1, %s596
          %s598 = sshll.u32 %s591, 4
          %s599 = int_to_ptr.vmem [resolvable:$true] %s598
          %604 = dma.hbm_to_vmem [thread:$0]  %s597, 256, %s599, %s588, 128, 128, 8
        $region88: #{tpu_custom_call.1} parent=79 // pred_fallthru
          _
      $region80: #{tpu_custom_call.1} parent=5 // pred_fallthru
        _
      %p605 = scmp.le.s32.totalorder 1, %s35
      %p606 = scmp.lt.s32.totalorder %s35, 3
      %p607 = pnand %p605, %p606
      %p608 = pneg %p607
      // Predicated region
      $region89: #{tpu_custom_call.1} parent=5 // pred_check
        _
      $region90: #{tpu_custom_call.1} parent=5 // pred_check_branch
        %610 = sbr.rel (%p607) target = $region92
      $region91: #{tpu_custom_call.1} parent=5 // pred_region
        %s611 = ssub.s32 %s35, 1
        %s612 = sand.u32 %s48, 1
        %s613 = scalar_lea.sflag [#allocation3], %s612
        %s614 = sand.u32 %s48, 1
        %s615 = smul.addr %s614, 4
        %s616 = scalar_lea.vmem [#allocation2], %s615
        // Predicated region
        $region93: #{tpu_custom_call.1} parent=91 // pred_check
          %p617 = pneg %p61
        $region94: #{tpu_custom_call.1} parent=91 // pred_check_branch
          %619 = sbr.rel (%p617) target = $region96
        $region95: #{tpu_custom_call.1} parent=91 // pred_region
          %620 = dma.done %s613, 64
        $region96: #{tpu_custom_call.1} parent=91 // pred_fallthru
          _
        %s621 = sand.u32 %s40, 1
        %s622 = scalar_lea.sflag [#allocation6], %s621
        %s623 = sand.u32 %s74, 1
        %s624 = smul.addr %s623, 16
        %s625 = scalar_lea.vmem [#allocation5], %s624
        // Predicated region
        $region97: #{tpu_custom_call.1} parent=91 // pred_check
          %p626 = pneg %p87
        $region98: #{tpu_custom_call.1} parent=91 // pred_check_branch
          %628 = sbr.rel (%p626) target = $region100
        $region99: #{tpu_custom_call.1} parent=91 // pred_region
          %629 = dma.done %s622, 256
        $region100: #{tpu_custom_call.1} parent=91 // pred_fallthru
          _
        // Predicated region
        $region101: #{tpu_custom_call.1} parent=91 // pred_check
          %p630 = pneg %p108
        $region102: #{tpu_custom_call.1} parent=91 // pred_check_branch
          %632 = sbr.rel (%p630) target = $region104
        $region103: #{tpu_custom_call.1} parent=91 // pred_region
          %633 = dma.done [#allocation6], 1024
        $region104: #{tpu_custom_call.1} parent=91 // pred_fallthru
          _
        // Predicated region
        $region105: #{tpu_custom_call.1} parent=91 // pred_check
          %p634 = pneg %p150
        $region106: #{tpu_custom_call.1} parent=91 // pred_check_branch
          %636 = sbr.rel (%p634) target = $region108
        $region107: #{tpu_custom_call.1} parent=91 // pred_region
          %637 = dma.done [#allocation9], 4096
        $region108: #{tpu_custom_call.1} parent=91 // pred_fallthru
          _
        // Predicated region
        $region109: #{tpu_custom_call.1} parent=91 // pred_check
          %p638 = pneg %p192
        $region110: #{tpu_custom_call.1} parent=91 // pred_check_branch
          %640 = sbr.rel (%p638) target = $region112
        $region111: #{tpu_custom_call.1} parent=91 // pred_region
          %641 = dma.done [#allocation9], 1024
        $region112: #{tpu_custom_call.1} parent=91 // pred_fallthru
          _
        // Predicated region
        $region113: #{tpu_custom_call.1} parent=91 // pred_check
          %p642 = pneg %p360
        $region114: #{tpu_custom_call.1} parent=91 // pred_check_branch
          %644 = sbr.rel (%p642) target = $region116
        $region115: #{tpu_custom_call.1} parent=91 // pred_region
          %645 = dma.done [#allocation12], 4096
        $region116: #{tpu_custom_call.1} parent=91 // pred_fallthru
          _
        // Predicated region
        $region117: #{tpu_custom_call.1} parent=91 // pred_check
          %p646 = pneg %p402
        $region118: #{tpu_custom_call.1} parent=91 // pred_check_branch
          %648 = sbr.rel (%p646) target = $region120
        $region119: #{tpu_custom_call.1} parent=91 // pred_region
          %649 = dma.done [#allocation12], 4096
        $region120: #{tpu_custom_call.1} parent=91 // pred_fallthru
          _
        %s650 = sand.u32 %s48, 1
        %s651 = scalar_lea.sflag [#allocation3], %s650
        %s652 = sand.u32 %s48, 1
        %s653 = smul.addr %s652, 4
        %s654 = scalar_lea.vmem [#allocation2], %s653
        %p655 = pneg %p61
        %p656 = pneg %p58
        %s657 = sand.u32 %s40, 1
        %s658 = scalar_lea.sflag [#allocation6], %s657
        %s659 = sand.u32 %s74, 1
        %s660 = smul.addr %s659, 16
        %s661 = scalar_lea.vmem [#allocation5], %s660
        %p662 = pneg %p87
        %p663 = pneg %p84
        %p664 = pneg %p108
        %p665 = pneg %p105
        %p666 = pneg %p129
        %p667 = pneg %p126
        %p668 = pneg %p150
        %p669 = pneg %p147
        %p670 = pneg %p171
        %p671 = pneg %p168
        %p672 = pneg %p192
        %p673 = pneg %p189
        %p674 = pneg %p213
        %p675 = pneg %p210
        %p676 = pneg %p234
        %p677 = pneg %p231
        %p678 = pneg %p255
        %p679 = pneg %p252
        %p680 = pneg %p276
        %p681 = pneg %p273
        %p682 = pneg %p297
        %p683 = pneg %p294
        %p684 = pneg %p318
        %p685 = pneg %p315
        %p686 = pneg %p339
        %p687 = pneg %p336
        %p688 = pneg %p360
        %p689 = pneg %p357
        %p690 = pneg %p381
        %p691 = pneg %p378
        %p692 = pneg %p402
        %p693 = pneg %p399
        %p694 = pneg %p423
        %p695 = pneg %p420
        %p696 = pneg %p449
        %p697 = pneg %p446
        %s698 = sand.u32 %s436, 1
        %s699 = scalar_lea.sflag [#allocation4], %s698
        %s700 = sand.u32 %s436, 1
        %s701 = smul.addr %s700, 8
        %s702 = scalar_lea.vmem [#allocation14], %s701
        %v704 = vld [vmem:[%s616] sm:$0xf]
        %v705 = vunpack.c.l.bf16 %v704
        %v706 = vld [vmem:[%s625] sm:$0xff]
        %v707 = vld [vmem:[%s625 + $0x8] sm:$0xff]
        %v708 = vunpack.c.l.bf16 %v706
        %v709 = vunpack.c.h.bf16 %v706
        %v710 = vunpack.c.l.bf16 %v707
        %v711 = vunpack.c.h.bf16 %v707
        %v712 = vld [vmem:[%s10] sm:$0x1]
        %v713 = vld [vmem:[%s11] sm:$0x1]
        %714 = vadd.xlane.f32.xlu0 %v705
        %v715 = vpop.xlane.xlu0 %714
        %v716 = vrcp.pop 128.0
        %v717 = vmul.f32 %v715, %v716
        %v718 = vsub.f32 %v705, %v717
        %v719 = vmul.f32 %v718, %v718
        %720 = vadd.xlane.f32.xlu0 %v719
        %v721 = vpop.xlane.xlu0 %720
        %v722 = vmul.f32 %v721, %v716
        %v723 = vadd.f32 %v722, 1e-05
        %v724 = vrsqrt.pop %v723
        %v725 = vmul.f32 %v718, %v724
        %v727 = vlaneseq
        %v728 = vshrl.u32 %v727, 7
        %v729 = vsub.s32 0, %v728
        %v730 = vrot.slane %v712, %v729
        %v732 = vmul.f32 %v725, %v730
        %v734 = vlaneseq
        %v735 = vshrl.u32 %v734, 7
        %v736 = vsub.s32 0, %v735
        %v737 = vrot.slane %v713, %v736
        %v739 = vadd.f32 %v732, %v737
        %v740 = vpack.c.bf16 %v739, %v739
        %v741 = vld [vmem:[%s8] sm:$0x3]
        %v742 = vld [vmem:[%s9] sm:$0x3]
        %v743 = vadd.f32 %v708, %v709
        %744 = vadd.xlane.f32.xlu0 %v743
        %v745 = vpop.xlane.xlu0 %744
        %v746 = vadd.f32 %v710, %v711
        %747 = vadd.xlane.f32.xlu0 %v746
        %v748 = vpop.xlane.xlu0 %747
        %v749 = vrcp.pop 256.0
        %v750 = vmul.f32 %v745, %v749
        %v751 = vmul.f32 %v748, %v749
        %v752 = vsub.f32 %v708, %v750
        %v753 = vsub.f32 %v709, %v750
        %v754 = vsub.f32 %v710, %v751
        %v755 = vsub.f32 %v711, %v751
        %v756 = vmul.f32 %v752, %v752
        %v757 = vmul.f32 %v753, %v753
        %v758 = vmul.f32 %v754, %v754
        %v759 = vmul.f32 %v755, %v755
        %v760 = vadd.f32 %v756, %v757
        %761 = vadd.xlane.f32.xlu0 %v760
        %v762 = vpop.xlane.xlu0 %761
        %v763 = vadd.f32 %v758, %v759
        %764 = vadd.xlane.f32.xlu0 %v763
        %v765 = vpop.xlane.xlu0 %764
        %v766 = vmul.f32 %v762, %v749
        %v767 = vmul.f32 %v765, %v749
        %v768 = vadd.f32 %v766, 1e-05
        %v769 = vadd.f32 %v767, 1e-05
        %v770 = vrsqrt.pop %v768
        %v771 = vrsqrt.pop %v769
        %v772 = vmul.f32 %v752, %v770
        %v773 = vmul.f32 %v753, %v770
        %v774 = vmul.f32 %v754, %v771
        %v775 = vmul.f32 %v755, %v771
        %v777 = vlaneseq
        %v778 = vshrl.u32 %v777, 7
        %v779 = vsub.s32 0, %v778
        %v780 = vrot.slane %v741, %v779
        %v781 = vlaneseq
        %v782 = vshrl.u32 %v781, 7
        %v783 = vsub.s32 1, %v782
        %v784 = vrot.slane %v741, %v783
        %v787 = vmul.f32 %v772, %v780
        %v788 = vmul.f32 %v773, %v784
        %v789 = vmul.f32 %v774, %v780
        %v790 = vmul.f32 %v775, %v784
        %v792 = vlaneseq
        %v793 = vshrl.u32 %v792, 7
        %v794 = vsub.s32 0, %v793
        %v795 = vrot.slane %v742, %v794
        %v796 = vlaneseq
        %v797 = vshrl.u32 %v796, 7
        %v798 = vsub.s32 1, %v797
        %v799 = vrot.slane %v742, %v798
        %v802 = vadd.f32 %v787, %v795
        %v803 = vadd.f32 %v788, %v799
        %v804 = vadd.f32 %v789, %v795
        %v805 = vadd.f32 %v790, %v799
        %v806 = vpack.c.bf16 %v804, %v802
        %v807 = vpack.c.bf16 %v805, %v803
        %v808 = vld [vmem:[#allocation7] sm:$0xf]
        %v809 = vld [vmem:[#allocation7 + $0x4] sm:$0xf]
        %v810 = vld [vmem:[#allocation7 + $0x8] sm:$0xf]
        %v811 = vld [vmem:[#allocation7 + $0xc] sm:$0xf]
        %v812 = vld [vmem:[#allocation7 + $0x10] sm:$0xf]
        %v813 = vld [vmem:[#allocation7 + $0x14] sm:$0xf]
        %v814 = vld [vmem:[#allocation7 + $0x18] sm:$0xf]
        %v815 = vld [vmem:[#allocation7 + $0x1c] sm:$0xf]
        %v816 = vld [vmem:[#allocation7 + $0x20] sm:$0xf]
        %v817 = vld [vmem:[#allocation7 + $0x24] sm:$0xf]
        %v818 = vld [vmem:[#allocation7 + $0x28] sm:$0xf]
        %v819 = vld [vmem:[#allocation7 + $0x2c] sm:$0xf]
        %v820 = vld [vmem:[#allocation7 + $0x30] sm:$0xf]
        %v821 = vld [vmem:[#allocation7 + $0x34] sm:$0xf]
        %v822 = vld [vmem:[#allocation7 + $0x38] sm:$0xf]
        %v823 = vld [vmem:[#allocation7 + $0x3c] sm:$0xf]
        %v824 = vld [vmem:[%s3] sm:$0x1]
        %v826 = vlaneseq
        %v827 = vshrl.u32 %v826, 7
        %v828 = vsub.s32 0, %v827
        %v829 = vrot.slane %v824, %v828
        %v847 = vunpack.c.l.b16 %v808
        %v848 = vunpack.c.l.b16 %v809
        %v849 = vunpack.c.l.b16 %v810
        %v850 = vunpack.c.l.b16 %v811
        %v851 = vunpack.c.l.b16 %v812
        %v852 = vunpack.c.l.b16 %v813
        %v853 = vunpack.c.l.b16 %v814
        %v854 = vunpack.c.l.b16 %v815
        %v855 = vunpack.c.l.b16 %v816
        %v856 = vunpack.c.l.b16 %v817
        %v857 = vunpack.c.l.b16 %v818
        %v858 = vunpack.c.l.b16 %v819
        %v859 = vunpack.c.l.b16 %v820
        %v860 = vunpack.c.l.b16 %v821
        %v861 = vunpack.c.l.b16 %v822
        %v862 = vunpack.c.l.b16 %v823
        %v863 = vpack.c.b16 %v848, %v847
        %v864 = vpack.c.b16 %v850, %v849
        %v865 = vpack.c.b16 %v852, %v851
        %v866 = vpack.c.b16 %v854, %v853
        %v867 = vpack.c.b16 %v856, %v855
        %v868 = vpack.c.b16 %v858, %v857
        %v869 = vpack.c.b16 %v860, %v859
        %v870 = vpack.c.b16 %v862, %v861
        %879 = vmatprep.subr.bf16.mxu0 0
        %880 = vmatpush1.bf16.msra.mxu0 %v863
        %881 = vmatprep.subr.bf16.mxu0 0
        %882 = vmatpush1.bf16.msra.mxu0 %v864
        %883 = vmatprep.subr.bf16.mxu0 0
        %884 = vmatpush1.bf16.msra.mxu0 %v865
        %885 = vmatprep.subr.bf16.mxu0 0
        %886 = vmatpush1.bf16.msra.mxu0 %v866
        %887 = vmatprep.subr.bf16.mxu0 0
        %888 = vmatpush1.bf16.msra.mxu0 %v867
        %889 = vmatprep.subr.bf16.mxu0 0
        %890 = vmatpush1.bf16.msra.mxu0 %v868
        %891 = vmatprep.subr.bf16.mxu0 0
        %892 = vmatpush1.bf16.msra.mxu0 %v869
        %893 = vmatprep.subr.bf16.mxu0 0
        %894 = vmatpush1.bf16.msra.mxu0 %v870
        %895 = vmatprep.subr.bf16.mxu0 0
        %896 = vmatpush1.bf16.msra.mxu0 0
        %897 = vmatprep.subr.bf16.mxu0 0
        %898 = vmatpush1.bf16.msra.mxu0 0
        %899 = vmatprep.subr.bf16.mxu0 0
        %900 = vmatpush1.bf16.msra.mxu0 0
        %901 = vmatprep.subr.bf16.mxu0 0
        %902 = vmatpush1.bf16.msra.mxu0 0
        %903 = vmatprep.subr.bf16.mxu0 0
        %904 = vmatpush1.bf16.msra.mxu0 0
        %905 = vmatprep.subr.bf16.mxu0 0
        %906 = vmatpush1.bf16.msra.mxu0 0
        %907 = vmatprep.subr.bf16.mxu0 0
        %908 = vmatpush1.bf16.msra.mxu0 0
        %909 = vmatprep.subr.bf16.mxu0 0
        %910 = vmatpush1.bf16.msra.mxu0 0
        %911 = vmatprep.mubr.bf16.mxu0 0
        %912 = vmatmul.mubr.bf16.gmra.mrb[0].mxu0 %v740
        %v913 = vpop.f32.mrb[0].mxu0
        %v914 = vadd.f32 %v829, %v913
        %v915 = vpop.f32.mrb[0].mxu0
        %v916 = vpop.f32.mrb[0].mxu0
        %v917 = vpop.f32.mrb[0].mxu0
        %918 = vdwg.mxu0
        %v919 = vld [vmem:[#allocation8] sm:$0xff]
        %v920 = vld [vmem:[#allocation8 + $0x8] sm:$0xff]
        %v921 = vld [vmem:[#allocation8 + $0x10] sm:$0xff]
        %v922 = vld [vmem:[#allocation8 + $0x18] sm:$0xff]
        %v923 = vld [vmem:[#allocation8 + $0x20] sm:$0xff]
        %v924 = vld [vmem:[#allocation8 + $0x28] sm:$0xff]
        %v925 = vld [vmem:[#allocation8 + $0x30] sm:$0xff]
        %v926 = vld [vmem:[#allocation8 + $0x38] sm:$0xff]
        %v927 = vld [vmem:[#allocation8 + $0x40] sm:$0xff]
        %v928 = vld [vmem:[#allocation8 + $0x48] sm:$0xff]
        %v929 = vld [vmem:[#allocation8 + $0x50] sm:$0xff]
        %v930 = vld [vmem:[#allocation8 + $0x58] sm:$0xff]
        %v931 = vld [vmem:[#allocation8 + $0x60] sm:$0xff]
        %v932 = vld [vmem:[#allocation8 + $0x68] sm:$0xff]
        %v933 = vld [vmem:[#allocation8 + $0x70] sm:$0xff]
        %v934 = vld [vmem:[#allocation8 + $0x78] sm:$0xff]
        %v935 = vld [vmem:[#allocation8 + $0x80] sm:$0xff]
        %v936 = vld [vmem:[#allocation8 + $0x88] sm:$0xff]
        %v937 = vld [vmem:[#allocation8 + $0x90] sm:$0xff]
        %v938 = vld [vmem:[#allocation8 + $0x98] sm:$0xff]
        %v939 = vld [vmem:[#allocation8 + $0xa0] sm:$0xff]
        %v940 = vld [vmem:[#allocation8 + $0xa8] sm:$0xff]
        %v941 = vld [vmem:[#allocation8 + $0xb0] sm:$0xff]
        %v942 = vld [vmem:[#allocation8 + $0xb8] sm:$0xff]
        %v943 = vld [vmem:[#allocation8 + $0xc0] sm:$0xff]
        %v944 = vld [vmem:[#allocation8 + $0xc8] sm:$0xff]
        %v945 = vld [vmem:[#allocation8 + $0xd0] sm:$0xff]
        %v946 = vld [vmem:[#allocation8 + $0xd8] sm:$0xff]
        %v947 = vld [vmem:[#allocation8 + $0xe0] sm:$0xff]
        %v948 = vld [vmem:[#allocation8 + $0xe8] sm:$0xff]
        %v949 = vld [vmem:[#allocation8 + $0xf0] sm:$0xff]
        %v950 = vld [vmem:[#allocation8 + $0xf8] sm:$0xff]
        %v951 = vld [vmem:[%s5] sm:$0x3]
        %v953 = vlaneseq
        %v954 = vshrl.u32 %v953, 7
        %v955 = vsub.s32 0, %v954
        %v956 = vrot.slane %v951, %v955
        %v957 = vlaneseq
        %v958 = vshrl.u32 %v957, 7
        %v959 = vsub.s32 1, %v958
        %v960 = vrot.slane %v951, %v959
        %v995 = vunpack.c.l.b16 %v919
        %v996 = vunpack.c.h.b16 %v919
        %v997 = vunpack.c.l.b16 %v920
        %v998 = vunpack.c.h.b16 %v920
        %v999 = vunpack.c.l.b16 %v921
        %v1000 = vunpack.c.h.b16 %v921
        %v1001 = vunpack.c.l.b16 %v922
        %v1002 = vunpack.c.h.b16 %v922
        %v1003 = vunpack.c.l.b16 %v923
        %v1004 = vunpack.c.h.b16 %v923
        %v1005 = vunpack.c.l.b16 %v924
        %v1006 = vunpack.c.h.b16 %v924
        %v1007 = vunpack.c.l.b16 %v925
        %v1008 = vunpack.c.h.b16 %v925
        %v1009 = vunpack.c.l.b16 %v926
        %v1010 = vunpack.c.h.b16 %v926
        %v1011 = vunpack.c.l.b16 %v927
        %v1012 = vunpack.c.h.b16 %v927
        %v1013 = vunpack.c.l.b16 %v928
        %v1014 = vunpack.c.h.b16 %v928
        %v1015 = vunpack.c.l.b16 %v929
        %v1016 = vunpack.c.h.b16 %v929
        %v1017 = vunpack.c.l.b16 %v930
        %v1018 = vunpack.c.h.b16 %v930
        %v1019 = vunpack.c.l.b16 %v931
        %v1020 = vunpack.c.h.b16 %v931
        %v1021 = vunpack.c.l.b16 %v932
        %v1022 = vunpack.c.h.b16 %v932
        %v1023 = vunpack.c.l.b16 %v933
        %v1024 = vunpack.c.h.b16 %v933
        %v1025 = vunpack.c.l.b16 %v934
        %v1026 = vunpack.c.h.b16 %v934
        %v1027 = vunpack.c.l.b16 %v935
        %v1028 = vunpack.c.h.b16 %v935
        %v1029 = vunpack.c.l.b16 %v936
        %v1030 = vunpack.c.h.b16 %v936
        %v1031 = vunpack.c.l.b16 %v937
        %v1032 = vunpack.c.h.b16 %v937
        %v1033 = vunpack.c.l.b16 %v938
        %v1034 = vunpack.c.h.b16 %v938
        %v1035 = vunpack.c.l.b16 %v939
        %v1036 = vunpack.c.h.b16 %v939
        %v1037 = vunpack.c.l.b16 %v940
        %v1038 = vunpack.c.h.b16 %v940
        %v1039 = vunpack.c.l.b16 %v941
        %v1040 = vunpack.c.h.b16 %v941
        %v1041 = vunpack.c.l.b16 %v942
        %v1042 = vunpack.c.h.b16 %v942
        %v1043 = vunpack.c.l.b16 %v943
        %v1044 = vunpack.c.h.b16 %v943
        %v1045 = vunpack.c.l.b16 %v944
        %v1046 = vunpack.c.h.b16 %v944
        %v1047 = vunpack.c.l.b16 %v945
        %v1048 = vunpack.c.h.b16 %v945
        %v1049 = vunpack.c.l.b16 %v946
        %v1050 = vunpack.c.h.b16 %v946
        %v1051 = vunpack.c.l.b16 %v947
        %v1052 = vunpack.c.h.b16 %v947
        %v1053 = vunpack.c.l.b16 %v948
        %v1054 = vunpack.c.h.b16 %v948
        %v1055 = vunpack.c.l.b16 %v949
        %v1056 = vunpack.c.h.b16 %v949
        %v1057 = vunpack.c.l.b16 %v950
        %v1058 = vunpack.c.h.b16 %v950
        %v1059 = vpack.c.b16 %v997, %v995
        %v1060 = vpack.c.b16 %v998, %v996
        %v1061 = vpack.c.b16 %v1001, %v999
        %v1062 = vpack.c.b16 %v1002, %v1000
        %v1063 = vpack.c.b16 %v1005, %v1003
        %v1064 = vpack.c.b16 %v1006, %v1004
        %v1065 = vpack.c.b16 %v1009, %v1007
        %v1066 = vpack.c.b16 %v1010, %v1008
        %v1067 = vpack.c.b16 %v1013, %v1011
        %v1068 = vpack.c.b16 %v1014, %v1012
        %v1069 = vpack.c.b16 %v1017, %v1015
        %v1070 = vpack.c.b16 %v1018, %v1016
        %v1071 = vpack.c.b16 %v1021, %v1019
        %v1072 = vpack.c.b16 %v1022, %v1020
        %v1073 = vpack.c.b16 %v1025, %v1023
        %v1074 = vpack.c.b16 %v1026, %v1024
        %v1075 = vpack.c.b16 %v1029, %v1027
        %v1076 = vpack.c.b16 %v1030, %v1028
        %v1077 = vpack.c.b16 %v1033, %v1031
        %v1078 = vpack.c.b16 %v1034, %v1032
        %v1079 = vpack.c.b16 %v1037, %v1035
        %v1080 = vpack.c.b16 %v1038, %v1036
        %v1081 = vpack.c.b16 %v1041, %v1039
        %v1082 = vpack.c.b16 %v1042, %v1040
        %v1083 = vpack.c.b16 %v1045, %v1043
        %v1084 = vpack.c.b16 %v1046, %v1044
        %v1085 = vpack.c.b16 %v1049, %v1047
        %v1086 = vpack.c.b16 %v1050, %v1048
        %v1087 = vpack.c.b16 %v1053, %v1051
        %v1088 = vpack.c.b16 %v1054, %v1052
        %v1089 = vpack.c.b16 %v1057, %v1055
        %v1090 = vpack.c.b16 %v1058, %v1056
        %1123 = vmatprep.subr.bf16.mxu0 %v1060
        %1124 = vmatpush1.bf16.msra.mxu0 %v1059
        %1125 = vmatprep.subr.bf16.mxu0 %v1062
        %1126 = vmatpush1.bf16.msra.mxu0 %v1061
        %1127 = vmatprep.subr.bf16.mxu0 %v1064
        %1128 = vmatpush1.bf16.msra.mxu0 %v1063
        %1129 = vmatprep.subr.bf16.mxu0 %v1066
        %1130 = vmatpush1.bf16.msra.mxu0 %v1065
        %1131 = vmatprep.subr.bf16.mxu0 %v1068
        %1132 = vmatpush1.bf16.msra.mxu0 %v1067
        %1133 = vmatprep.subr.bf16.mxu0 %v1070
        %1134 = vmatpush1.bf16.msra.mxu0 %v1069
        %1135 = vmatprep.subr.bf16.mxu0 %v1072
        %1136 = vmatpush1.bf16.msra.mxu0 %v1071
        %1137 = vmatprep.subr.bf16.mxu0 %v1074
        %1138 = vmatpush1.bf16.msra.mxu0 %v1073
        %1139 = vmatprep.subr.bf16.mxu0 %v1076
        %1140 = vmatpush1.bf16.msra.mxu0 %v1075
        %1141 = vmatprep.subr.bf16.mxu0 %v1078
        %1142 = vmatpush1.bf16.msra.mxu0 %v1077
        %1143 = vmatprep.subr.bf16.mxu0 %v1080
        %1144 = vmatpush1.bf16.msra.mxu0 %v1079
        %1145 = vmatprep.subr.bf16.mxu0 %v1082
        %1146 = vmatpush1.bf16.msra.mxu0 %v1081
        %1147 = vmatprep.subr.bf16.mxu0 %v1084
        %1148 = vmatpush1.bf16.msra.mxu0 %v1083
        %1149 = vmatprep.subr.bf16.mxu0 %v1086
        %1150 = vmatpush1.bf16.msra.mxu0 %v1085
        %1151 = vmatprep.subr.bf16.mxu0 %v1088
        %1152 = vmatpush1.bf16.msra.mxu0 %v1087
        %1153 = vmatprep.subr.bf16.mxu0 %v1090
        %1154 = vmatpush1.bf16.msra.mxu0 %v1089
        %1155 = vmatprep.mubr.bf16.mxu0 %v807
        %1156 = vmatmul.mubr.bf16.gmra.mrb[0].mxu0 %v806
        %v1157 = vpop.f32.mrb[0].mxu0
        %v1158 = vadd.f32 %v956, %v1157
        %v1159 = vpop.f32.mrb[0].mxu0
        %v1160 = vadd.f32 %v960, %v1159
        %v1161 = vpop.f32.mrb[0].mxu0
        %v1162 = vadd.f32 %v956, %v1161
        %v1163 = vpop.f32.mrb[0].mxu0
        %v1164 = vadd.f32 %v960, %v1163
        %1165 = vdwg.mxu0
        %v1166 = vmul.f32 %v914, 0.17677669
        %v1167 = vpack.c.bf16 %v1166, %v1166
        %v1168 = vpack.c.bf16 %v1162, %v1158
        %v1169 = vpack.c.bf16 %v1164, %v1160
        %1171 = vrot.lane.b32.xlu0 %v1167, 96
        %v1172 = vpop.permute.xlu0 %1171
        %1173 = vrot.lane.b32.xlu0 %v1167, 64
        %v1174 = vpop.permute.xlu0 %1173
        %1175 = vrot.lane.b32.xlu0 %v1167, 32
        %v1176 = vpop.permute.xlu0 %1175
        %1178 = vrot.lane.b32.xlu0 %v1168, 96
        %v1179 = vpop.permute.xlu0 %1178
        %1180 = vrot.lane.b32.xlu0 %v1168, 64
        %v1181 = vpop.permute.xlu0 %1180
        %1182 = vrot.lane.b32.xlu0 %v1168, 32
        %v1183 = vpop.permute.xlu0 %1182
        %1185 = vrot.lane.b32.xlu0 %v1169, 96
        %v1186 = vpop.permute.xlu0 %1185
        %1188 = vrot.lane.b32.xlu0 %v1169, 64
        %v1189 = vpop.permute.xlu0 %1188
        %1191 = vrot.lane.b32.xlu0 %v1169, 32
        %v1192 = vpop.permute.xlu0 %1191
        %vm1194 = vcmask 261120
        %v1196 = vsel %vm1194, %v1167, 0
        %v1199 = vsel %vm1194, %v1168, 0
        %1201 = vmatprep.subr.bf16.mxu0 0
        %1202 = vmatpush1.bf16.xpose.msra.mxu0 %v1199
        %1203 = vmatprep.subr.bf16.mxu0 0
        %1204 = vmatpush1.bf16.xpose.msra.mxu0 0
        %1205 = vmatprep.subr.bf16.mxu0 0
        %1206 = vmatpush1.bf16.xpose.msra.mxu0 0
        %1207 = vmatprep.subr.bf16.mxu0 0
        %1208 = vmatpush1.bf16.xpose.msra.mxu0 0
        %1209 = vmatprep.subr.bf16.mxu0 0
        %1210 = vmatpush1.bf16.xpose.msra.mxu0 0
        %1211 = vmatprep.subr.bf16.mxu0 0
        %1212 = vmatpush1.bf16.xpose.msra.mxu0 0
        %1213 = vmatprep.subr.bf16.mxu0 0
        %1214 = vmatpush1.bf16.xpose.msra.mxu0 0
        %1215 = vmatprep.subr.bf16.mxu0 0
        %1216 = vmatpush1.bf16.xpose.msra.mxu0 0
        %1217 = vmatprep.subr.bf16.mxu0 0
        %1218 = vmatpush1.bf16.xpose.msra.mxu0 0
        %1219 = vmatprep.subr.bf16.mxu0 0
        %1220 = vmatpush1.bf16.xpose.msra.mxu0 0
        %1221 = vmatprep.subr.bf16.mxu0 0
        %1222 = vmatpush1.bf16.xpose.msra.mxu0 0
        %1223 = vmatprep.subr.bf16.mxu0 0
        %1224 = vmatpush1.bf16.xpose.msra.mxu0 0
        %1225 = vmatprep.subr.bf16.mxu0 0
        %1226 = vmatpush1.bf16.xpose.msra.mxu0 0
        %1227 = vmatprep.subr.bf16.mxu0 0
        %1228 = vmatpush1.bf16.xpose.msra.mxu0 0
        %1229 = vmatprep.subr.bf16.mxu0 0
        %1230 = vmatpush1.bf16.xpose.msra.mxu0 0
        %1231 = vmatprep.subr.bf16.mxu0 0
        %1232 = vmatpush1.bf16.xpose.msra.mxu0 0
        %1233 = vmatprep.mubr.bf16.mxu0 0
        %1234 = vmatmul.mubr.bf16.gmra.mrb[0].mxu0 %v1196
        %v1235 = vpop.f32.mrb[0].mxu0
        %v1236 = vadd.f32 0.0, %v1235
        %v1237 = vpop.f32.mrb[0].mxu0
        %v1238 = vpop.f32.mrb[0].mxu0
        %v1239 = vpop.f32.mrb[0].mxu0
        %1240 = vdwg.mxu0
        %v1242 = vsel %vm1194, %v1172, 0
        %v1245 = vsel %vm1194, %v1179, 0
        %1247 = vmatprep.subr.bf16.mxu0 0
        %1248 = vmatpush1.bf16.xpose.msra.mxu0 %v1245
        %1249 = vmatprep.subr.bf16.mxu0 0
        %1250 = vmatpush1.bf16.xpose.msra.mxu0 0
        %1251 = vmatprep.subr.bf16.mxu0 0
        %1252 = vmatpush1.bf16.xpose.msra.mxu0 0
        %1253 = vmatprep.subr.bf16.mxu0 0
        %1254 = vmatpush1.bf16.xpose.msra.mxu0 0
        %1255 = vmatprep.subr.bf16.mxu0 0
        %1256 = vmatpush1.bf16.xpose.msra.mxu0 0
        %1257 = vmatprep.subr.bf16.mxu0 0
        %1258 = vmatpush1.bf16.xpose.msra.mxu0 0
        %1259 = vmatprep.subr.bf16.mxu0 0
        %1260 = vmatpush1.bf16.xpose.msra.mxu0 0
        %1261 = vmatprep.subr.bf16.mxu0 0
        %1262 = vmatpush1.bf16.xpose.msra.mxu0 0
        %1263 = vmatprep.subr.bf16.mxu0 0
        %1264 = vmatpush1.bf16.xpose.msra.mxu0 0
        %1265 = vmatprep.subr.bf16.mxu0 0
        %1266 = vmatpush1.bf16.xpose.msra.mxu0 0
        %1267 = vmatprep.subr.bf16.mxu0 0
        %1268 = vmatpush1.bf16.xpose.msra.mxu0 0
        %1269 = vmatprep.subr.bf16.mxu0 0
        %1270 = vmatpush1.bf16.xpose.msra.mxu0 0
        %1271 = vmatprep.subr.bf16.mxu0 0
        %1272 = vmatpush1.bf16.xpose.msra.mxu0 0
        %1273 = vmatprep.subr.bf16.mxu0 0
        %1274 = vmatpush1.bf16.xpose.msra.mxu0 0
        %1275 = vmatprep.subr.bf16.mxu0 0
        %1276 = vmatpush1.bf16.xpose.msra.mxu0 0
        %1277 = vmatprep.subr.bf16.mxu0 0
        %1278 = vmatpush1.bf16.xpose.msra.mxu0 0
        %1279 = vmatprep.mubr.bf16.mxu0 0
        %1280 = vmatmul.mubr.bf16.gmra.mrb[0].mxu0 %v1242
        %v1281 = vpop.f32.mrb[0].mxu0
        %v1282 = vadd.f32 0.0, %v1281
        %v1283 = vpop.f32.mrb[0].mxu0
        %v1284 = vpop.f32.mrb[0].mxu0
        %v1285 = vpop.f32.mrb[0].mxu0
        %1286 = vdwg.mxu0
        %v1288 = vsel %vm1194, %v1174, 0
        %v1291 = vsel %vm1194, %v1181, 0
        %1293 = vmatprep.subr.bf16.mxu0 0
        %1294 = vmatpush1.bf16.xpose.msra.mxu0 %v1291
        %1295 = vmatprep.subr.bf16.mxu0 0
        %1296 = vmatpush1.bf16.xpose.msra.mxu0 0
        %1297 = vmatprep.subr.bf16.mxu0 0
        %1298 = vmatpush1.bf16.xpose.msra.mxu0 0
        %1299 = vmatprep.subr.bf16.mxu0 0
        %1300 = vmatpush1.bf16.xpose.msra.mxu0 0
        %1301 = vmatprep.subr.bf16.mxu0 0
        %1302 = vmatpush1.bf16.xpose.msra.mxu0 0
        %1303 = vmatprep.subr.bf16.mxu0 0
        %1304 = vmatpush1.bf16.xpose.msra.mxu0 0
        %1305 = vmatprep.subr.bf16.mxu0 0
        %1306 = vmatpush1.bf16.xpose.msra.mxu0 0
        %1307 = vmatprep.subr.bf16.mxu0 0
        %1308 = vmatpush1.bf16.xpose.msra.mxu0 0
        %1309 = vmatprep.subr.bf16.mxu0 0
        %1310 = vmatpush1.bf16.xpose.msra.mxu0 0
        %1311 = vmatprep.subr.bf16.mxu0 0
        %1312 = vmatpush1.bf16.xpose.msra.mxu0 0
        %1313 = vmatprep.subr.bf16.mxu0 0
        %1314 = vmatpush1.bf16.xpose.msra.mxu0 0
        %1315 = vmatprep.subr.bf16.mxu0 0
        %1316 = vmatpush1.bf16.xpose.msra.mxu0 0
        %1317 = vmatprep.subr.bf16.mxu0 0
        %1318 = vmatpush1.bf16.xpose.msra.mxu0 0
        %1319 = vmatprep.subr.bf16.mxu0 0
        %1320 = vmatpush1.bf16.xpose.msra.mxu0 0
        %1321 = vmatprep.subr.bf16.mxu0 0
        %1322 = vmatpush1.bf16.xpose.msra.mxu0 0
        %1323 = vmatprep.subr.bf16.mxu0 0
        %1324 = vmatpush1.bf16.xpose.msra.mxu0 0
        %1325 = vmatprep.mubr.bf16.mxu0 0
        %1326 = vmatmul.mubr.bf16.gmra.mrb[0].mxu0 %v1288
        %v1327 = vpop.f32.mrb[0].mxu0
        %v1328 = vadd.f32 0.0, %v1327
        %v1329 = vpop.f32.mrb[0].mxu0
        %v1330 = vpop.f32.mrb[0].mxu0
        %v1331 = vpop.f32.mrb[0].mxu0
        %1332 = vdwg.mxu0
        %v1334 = vsel %vm1194, %v1176, 0
        %v1337 = vsel %vm1194, %v1183, 0
        %1339 = vmatprep.subr.bf16.mxu0 0
        %1340 = vmatpush1.bf16.xpose.msra.mxu0 %v1337
        %1341 = vmatprep.subr.bf16.mxu0 0
        %1342 = vmatpush1.bf16.xpose.msra.mxu0 0
        %1343 = vmatprep.subr.bf16.mxu0 0
        %1344 = vmatpush1.bf16.xpose.msra.mxu0 0
        %1345 = vmatprep.subr.bf16.mxu0 0
        %1346 = vmatpush1.bf16.xpose.msra.mxu0 0
        %1347 = vmatprep.subr.bf16.mxu0 0
        %1348 = vmatpush1.bf16.xpose.msra.mxu0 0
        %1349 = vmatprep.subr.bf16.mxu0 0
        %1350 = vmatpush1.bf16.xpose.msra.mxu0 0
        %1351 = vmatprep.subr.bf16.mxu0 0
        %1352 = vmatpush1.bf16.xpose.msra.mxu0 0
        %1353 = vmatprep.subr.bf16.mxu0 0
        %1354 = vmatpush1.bf16.xpose.msra.mxu0 0
        %1355 = vmatprep.subr.bf16.mxu0 0
        %1356 = vmatpush1.bf16.xpose.msra.mxu0 0
        %1357 = vmatprep.subr.bf16.mxu0 0
        %1358 = vmatpush1.bf16.xpose.msra.mxu0 0
        %1359 = vmatprep.subr.bf16.mxu0 0
        %1360 = vmatpush1.bf16.xpose.msra.mxu0 0
        %1361 = vmatprep.subr.bf16.mxu0 0
        %1362 = vmatpush1.bf16.xpose.msra.mxu0 0
        %1363 = vmatprep.subr.bf16.mxu0 0
        %1364 = vmatpush1.bf16.xpose.msra.mxu0 0
        %1365 = vmatprep.subr.bf16.mxu0 0
        %1366 = vmatpush1.bf16.xpose.msra.mxu0 0
        %1367 = vmatprep.subr.bf16.mxu0 0
        %1368 = vmatpush1.bf16.xpose.msra.mxu0 0
        %1369 = vmatprep.subr.bf16.mxu0 0
        %1370 = vmatpush1.bf16.xpose.msra.mxu0 0
        %1371 = vmatprep.mubr.bf16.mxu0 0
        %1372 = vmatmul.mubr.bf16.gmra.mrb[0].mxu0 %v1334
        %v1373 = vpop.f32.mrb[0].mxu0
        %v1374 = vadd.f32 0.0, %v1373
        %v1375 = vpop.f32.mrb[0].mxu0
        %v1376 = vpop.f32.mrb[0].mxu0
        %v1377 = vpop.f32.mrb[0].mxu0
        %1378 = vdwg.mxu0
        %vm1379 = vcmask 130048
        %v1380 = vsel %vm1379, %v1236, -inf
        %1381 = vmax.xlane.f32.xlu0 %v1380
        %v1382 = vpop.xlane.xlu0 %1381
        %v1383 = vsel %vm1379, %v1282, -inf
        %1384 = vmax.xlane.f32.xlu0 %v1383
        %v1385 = vpop.xlane.xlu0 %1384
        %v1386 = vsel %vm1379, %v1328, -inf
        %1387 = vmax.xlane.f32.xlu0 %v1386
        %v1388 = vpop.xlane.xlu0 %1387
        %v1389 = vsel %vm1379, %v1374, -inf
        %1390 = vmax.xlane.f32.xlu0 %v1389
        %v1391 = vpop.xlane.xlu0 %1390
        %v1392 = vsub.f32 %v1236, %v1382
        %v1393 = vsub.f32 %v1282, %v1385
        %v1394 = vsub.f32 %v1328, %v1388
        %v1395 = vsub.f32 %v1374, %v1391
        %v1396 = vmul.f32 %v1392, 1.442695
        %v1397 = vpow.pop %v1396
        %v1398 = vmul.f32 %v1393, 1.442695
        %v1399 = vpow.pop %v1398
        %v1400 = vmul.f32 %v1394, 1.442695
        %v1401 = vpow.pop %v1400
        %v1402 = vmul.f32 %v1395, 1.442695
        %v1403 = vpow.pop %v1402
        %v1404 = vsel %vm1379, %v1397, 0.0
        %1405 = vadd.xlane.f32.xlu0 %v1404
        %v1406 = vpop.xlane.xlu0 %1405
        %v1407 = vsel %vm1379, %v1399, 0.0
        %1408 = vadd.xlane.f32.xlu0 %v1407
        %v1409 = vpop.xlane.xlu0 %1408
        %v1410 = vsel %vm1379, %v1401, 0.0
        %1411 = vadd.xlane.f32.xlu0 %v1410
        %v1412 = vpop.xlane.xlu0 %1411
        %v1413 = vsel %vm1379, %v1403, 0.0
        %1414 = vadd.xlane.f32.xlu0 %v1413
        %v1415 = vpop.xlane.xlu0 %1414
        %v1416 = vrcp.pop %v1406
        %v1417 = vrcp.pop %v1409
        %v1418 = vrcp.pop %v1412
        %v1419 = vrcp.pop %v1415
        %v1420 = vpack.c.bf16 %v1397, %v1397
        %v1421 = vpack.c.bf16 %v1399, %v1399
        %v1422 = vpack.c.bf16 %v1401, %v1401
        %v1423 = vpack.c.bf16 %v1403, %v1403
        %v1425 = vsel %vm1379, %v1420, 0
        %1427 = vmatprep.subr.bf16.mxu0 0
        %1428 = vmatpush1.bf16.msra.mxu0 %v1169
        %1429 = vmatprep.subr.bf16.mxu0 0
        %1430 = vmatpush1.bf16.msra.mxu0 0
        %1431 = vmatprep.subr.bf16.mxu0 0
        %1432 = vmatpush1.bf16.msra.mxu0 0
        %1433 = vmatprep.subr.bf16.mxu0 0
        %1434 = vmatpush1.bf16.msra.mxu0 0
        %1435 = vmatprep.subr.bf16.mxu0 0
        %1436 = vmatpush1.bf16.msra.mxu0 0
        %1437 = vmatprep.subr.bf16.mxu0 0
        %1438 = vmatpush1.bf16.msra.mxu0 0
        %1439 = vmatprep.subr.bf16.mxu0 0
        %1440 = vmatpush1.bf16.msra.mxu0 0
        %1441 = vmatprep.subr.bf16.mxu0 0
        %1442 = vmatpush1.bf16.msra.mxu0 0
        %1443 = vmatprep.subr.bf16.mxu0 0
        %1444 = vmatpush1.bf16.msra.mxu0 0
        %1445 = vmatprep.subr.bf16.mxu0 0
        %1446 = vmatpush1.bf16.msra.mxu0 0
        %1447 = vmatprep.subr.bf16.mxu0 0
        %1448 = vmatpush1.bf16.msra.mxu0 0
        %1449 = vmatprep.subr.bf16.mxu0 0
        %1450 = vmatpush1.bf16.msra.mxu0 0
        %1451 = vmatprep.subr.bf16.mxu0 0
        %1452 = vmatpush1.bf16.msra.mxu0 0
        %1453 = vmatprep.subr.bf16.mxu0 0
        %1454 = vmatpush1.bf16.msra.mxu0 0
        %1455 = vmatprep.subr.bf16.mxu0 0
        %1456 = vmatpush1.bf16.msra.mxu0 0
        %1457 = vmatprep.subr.bf16.mxu0 0
        %1458 = vmatpush1.bf16.msra.mxu0 0
        %1459 = vmatprep.mubr.bf16.mxu0 0
        %1460 = vmatmul.mubr.bf16.gmra.mrb[0].mxu0 %v1425
        %v1461 = vpop.f32.mrb[0].mxu0
        %v1462 = vadd.f32 0.0, %v1461
        %v1463 = vpop.f32.mrb[0].mxu0
        %v1464 = vpop.f32.mrb[0].mxu0
        %v1465 = vpop.f32.mrb[0].mxu0
        %1466 = vdwg.mxu0
        %v1468 = vsel %vm1379, %v1421, 0
        %1470 = vmatprep.subr.bf16.mxu0 0
        %1471 = vmatpush1.bf16.msra.mxu0 %v1186
        %1472 = vmatprep.subr.bf16.mxu0 0
        %1473 = vmatpush1.bf16.msra.mxu0 0
        %1474 = vmatprep.subr.bf16.mxu0 0
        %1475 = vmatpush1.bf16.msra.mxu0 0
        %1476 = vmatprep.subr.bf16.mxu0 0
        %1477 = vmatpush1.bf16.msra.mxu0 0
        %1478 = vmatprep.subr.bf16.mxu0 0
        %1479 = vmatpush1.bf16.msra.mxu0 0
        %1480 = vmatprep.subr.bf16.mxu0 0
        %1481 = vmatpush1.bf16.msra.mxu0 0
        %1482 = vmatprep.subr.bf16.mxu0 0
        %1483 = vmatpush1.bf16.msra.mxu0 0
        %1484 = vmatprep.subr.bf16.mxu0 0
        %1485 = vmatpush1.bf16.msra.mxu0 0
        %1486 = vmatprep.subr.bf16.mxu0 0
        %1487 = vmatpush1.bf16.msra.mxu0 0
        %1488 = vmatprep.subr.bf16.mxu0 0
        %1489 = vmatpush1.bf16.msra.mxu0 0
        %1490 = vmatprep.subr.bf16.mxu0 0
        %1491 = vmatpush1.bf16.msra.mxu0 0
        %1492 = vmatprep.subr.bf16.mxu0 0
        %1493 = vmatpush1.bf16.msra.mxu0 0
        %1494 = vmatprep.subr.bf16.mxu0 0
        %1495 = vmatpush1.bf16.msra.mxu0 0
        %1496 = vmatprep.subr.bf16.mxu0 0
        %1497 = vmatpush1.bf16.msra.mxu0 0
        %1498 = vmatprep.subr.bf16.mxu0 0
        %1499 = vmatpush1.bf16.msra.mxu0 0
        %1500 = vmatprep.subr.bf16.mxu0 0
        %1501 = vmatpush1.bf16.msra.mxu0 0
        %1502 = vmatprep.mubr.bf16.mxu0 0
        %1503 = vmatmul.mubr.bf16.gmra.mrb[0].mxu0 %v1468
        %v1504 = vpop.f32.mrb[0].mxu0
        %v1505 = vadd.f32 0.0, %v1504
        %v1506 = vpop.f32.mrb[0].mxu0
        %v1507 = vpop.f32.mrb[0].mxu0
        %v1508 = vpop.f32.mrb[0].mxu0
        %1509 = vdwg.mxu0
        %v1511 = vsel %vm1379, %v1422, 0
        %1513 = vmatprep.subr.bf16.mxu0 0
        %1514 = vmatpush1.bf16.msra.mxu0 %v1189
        %1515 = vmatprep.subr.bf16.mxu0 0
        %1516 = vmatpush1.bf16.msra.mxu0 0
        %1517 = vmatprep.subr.bf16.mxu0 0
        %1518 = vmatpush1.bf16.msra.mxu0 0
        %1519 = vmatprep.subr.bf16.mxu0 0
        %1520 = vmatpush1.bf16.msra.mxu0 0
        %1521 = vmatprep.subr.bf16.mxu0 0
        %1522 = vmatpush1.bf16.msra.mxu0 0
        %1523 = vmatprep.subr.bf16.mxu0 0
        %1524 = vmatpush1.bf16.msra.mxu0 0
        %1525 = vmatprep.subr.bf16.mxu0 0
        %1526 = vmatpush1.bf16.msra.mxu0 0
        %1527 = vmatprep.subr.bf16.mxu0 0
        %1528 = vmatpush1.bf16.msra.mxu0 0
        %1529 = vmatprep.subr.bf16.mxu0 0
        %1530 = vmatpush1.bf16.msra.mxu0 0
        %1531 = vmatprep.subr.bf16.mxu0 0
        %1532 = vmatpush1.bf16.msra.mxu0 0
        %1533 = vmatprep.subr.bf16.mxu0 0
        %1534 = vmatpush1.bf16.msra.mxu0 0
        %1535 = vmatprep.subr.bf16.mxu0 0
        %1536 = vmatpush1.bf16.msra.mxu0 0
        %1537 = vmatprep.subr.bf16.mxu0 0
        %1538 = vmatpush1.bf16.msra.mxu0 0
        %1539 = vmatprep.subr.bf16.mxu0 0
        %1540 = vmatpush1.bf16.msra.mxu0 0
        %1541 = vmatprep.subr.bf16.mxu0 0
        %1542 = vmatpush1.bf16.msra.mxu0 0
        %1543 = vmatprep.subr.bf16.mxu0 0
        %1544 = vmatpush1.bf16.msra.mxu0 0
        %1545 = vmatprep.mubr.bf16.mxu0 0
        %1546 = vmatmul.mubr.bf16.gmra.mrb[0].mxu0 %v1511
        %v1547 = vpop.f32.mrb[0].mxu0
        %v1548 = vadd.f32 0.0, %v1547
        %v1549 = vpop.f32.mrb[0].mxu0
        %v1550 = vpop.f32.mrb[0].mxu0
        %v1551 = vpop.f32.mrb[0].mxu0
        %1552 = vdwg.mxu0
        %v1554 = vsel %vm1379, %v1423, 0
        %1556 = vmatprep.subr.bf16.mxu0 0
        %1557 = vmatpush1.bf16.msra.mxu0 %v1192
        %1558 = vmatprep.subr.bf16.mxu0 0
        %1559 = vmatpush1.bf16.msra.mxu0 0
        %1560 = vmatprep.subr.bf16.mxu0 0
        %1561 = vmatpush1.bf16.msra.mxu0 0
        %1562 = vmatprep.subr.bf16.mxu0 0
        %1563 = vmatpush1.bf16.msra.mxu0 0
        %1564 = vmatprep.subr.bf16.mxu0 0
        %1565 = vmatpush1.bf16.msra.mxu0 0
        %1566 = vmatprep.subr.bf16.mxu0 0
        %1567 = vmatpush1.bf16.msra.mxu0 0
        %1568 = vmatprep.subr.bf16.mxu0 0
        %1569 = vmatpush1.bf16.msra.mxu0 0
        %1570 = vmatprep.subr.bf16.mxu0 0
        %1571 = vmatpush1.bf16.msra.mxu0 0
        %1572 = vmatprep.subr.bf16.mxu0 0
        %1573 = vmatpush1.bf16.msra.mxu0 0
        %1574 = vmatprep.subr.bf16.mxu0 0
        %1575 = vmatpush1.bf16.msra.mxu0 0
        %1576 = vmatprep.subr.bf16.mxu0 0
        %1577 = vmatpush1.bf16.msra.mxu0 0
        %1578 = vmatprep.subr.bf16.mxu0 0
        %1579 = vmatpush1.bf16.msra.mxu0 0
        %1580 = vmatprep.subr.bf16.mxu0 0
        %1581 = vmatpush1.bf16.msra.mxu0 0
        %1582 = vmatprep.subr.bf16.mxu0 0
        %1583 = vmatpush1.bf16.msra.mxu0 0
        %1584 = vmatprep.subr.bf16.mxu0 0
        %1585 = vmatpush1.bf16.msra.mxu0 0
        %1586 = vmatprep.subr.bf16.mxu0 0
        %1587 = vmatpush1.bf16.msra.mxu0 0
        %1588 = vmatprep.mubr.bf16.mxu0 0
        %1589 = vmatmul.mubr.bf16.gmra.mrb[0].mxu0 %v1554
        %v1590 = vpop.f32.mrb[0].mxu0
        %v1591 = vadd.f32 0.0, %v1590
        %v1592 = vpop.f32.mrb[0].mxu0
        %v1593 = vpop.f32.mrb[0].mxu0
        %v1594 = vpop.f32.mrb[0].mxu0
        %1595 = vdwg.mxu0
        %v1596 = vmul.f32 %v1462, %v1416
        %v1597 = vmul.f32 %v1505, %v1417
        %v1598 = vmul.f32 %v1548, %v1418
        %v1599 = vmul.f32 %v1591, %v1419
        %1601 = vrot.lane.b32.xlu0 %v1597, 32
        %v1602 = vpop.permute.xlu0 %1601
        %1605 = vrot.lane.b32.xlu0 %v1598, 64
        %v1606 = vpop.permute.xlu0 %1605
        %1609 = vrot.lane.b32.xlu0 %v1599, 96
        %v1610 = vpop.permute.xlu0 %1609
        %v1612 = vsel %vm1194, %v1596, %v1602
        %vm1613 = vcmask 523264
        %v1614 = vsel %vm1613, %v1612, %v1606
        %vm1615 = vcmask 785408
        %v1616 = vsel %vm1615, %v1614, %v1610
        %v1617 = vpack.c.bf16 %v1616, %v1616
        %v1618 = vld [vmem:[#allocation10] sm:$0xf]
        %v1619 = vld [vmem:[#allocation10 + $0x4] sm:$0xf]
        %v1620 = vld [vmem:[#allocation10 + $0x8] sm:$0xf]
        %v1621 = vld [vmem:[#allocation10 + $0xc] sm:$0xf]
        %v1622 = vld [vmem:[#allocation10 + $0x10] sm:$0xf]
        %v1623 = vld [vmem:[#allocation10 + $0x14] sm:$0xf]
        %v1624 = vld [vmem:[#allocation10 + $0x18] sm:$0xf]
        %v1625 = vld [vmem:[#allocation10 + $0x1c] sm:$0xf]
        %v1626 = vld [vmem:[#allocation10 + $0x20] sm:$0xf]
        %v1627 = vld [vmem:[#allocation10 + $0x24] sm:$0xf]
        %v1628 = vld [vmem:[#allocation10 + $0x28] sm:$0xf]
        %v1629 = vld [vmem:[#allocation10 + $0x2c] sm:$0xf]
        %v1630 = vld [vmem:[#allocation10 + $0x30] sm:$0xf]
        %v1631 = vld [vmem:[#allocation10 + $0x34] sm:$0xf]
        %v1632 = vld [vmem:[#allocation10 + $0x38] sm:$0xf]
        %v1633 = vld [vmem:[#allocation10 + $0x3c] sm:$0xf]
        %v1634 = vld [vmem:[%s7] sm:$0x1]
        %v1636 = vlaneseq
        %v1637 = vshrl.u32 %v1636, 7
        %v1638 = vsub.s32 0, %v1637
        %v1639 = vrot.slane %v1634, %v1638
        %v1657 = vunpack.c.l.b16 %v1618
        %v1658 = vunpack.c.l.b16 %v1619
        %v1659 = vunpack.c.l.b16 %v1620
        %v1660 = vunpack.c.l.b16 %v1621
        %v1661 = vunpack.c.l.b16 %v1622
        %v1662 = vunpack.c.l.b16 %v1623
        %v1663 = vunpack.c.l.b16 %v1624
        %v1664 = vunpack.c.l.b16 %v1625
        %v1665 = vunpack.c.l.b16 %v1626
        %v1666 = vunpack.c.l.b16 %v1627
        %v1667 = vunpack.c.l.b16 %v1628
        %v1668 = vunpack.c.l.b16 %v1629
        %v1669 = vunpack.c.l.b16 %v1630
        %v1670 = vunpack.c.l.b16 %v1631
        %v1671 = vunpack.c.l.b16 %v1632
        %v1672 = vunpack.c.l.b16 %v1633
        %v1673 = vpack.c.b16 %v1658, %v1657
        %v1674 = vpack.c.b16 %v1660, %v1659
        %v1675 = vpack.c.b16 %v1662, %v1661
        %v1676 = vpack.c.b16 %v1664, %v1663
        %v1677 = vpack.c.b16 %v1666, %v1665
        %v1678 = vpack.c.b16 %v1668, %v1667
        %v1679 = vpack.c.b16 %v1670, %v1669
        %v1680 = vpack.c.b16 %v1672, %v1671
        %1689 = vmatprep.subr.bf16.mxu0 0
        %1690 = vmatpush1.bf16.msra.mxu0 %v1673
        %1691 = vmatprep.subr.bf16.mxu0 0
        %1692 = vmatpush1.bf16.msra.mxu0 %v1674
        %1693 = vmatprep.subr.bf16.mxu0 0
        %1694 = vmatpush1.bf16.msra.mxu0 %v1675
        %1695 = vmatprep.subr.bf16.mxu0 0
        %1696 = vmatpush1.bf16.msra.mxu0 %v1676
        %1697 = vmatprep.subr.bf16.mxu0 0
        %1698 = vmatpush1.bf16.msra.mxu0 %v1677
        %1699 = vmatprep.subr.bf16.mxu0 0
        %1700 = vmatpush1.bf16.msra.mxu0 %v1678
        %1701 = vmatprep.subr.bf16.mxu0 0
        %1702 = vmatpush1.bf16.msra.mxu0 %v1679
        %1703 = vmatprep.subr.bf16.mxu0 0
        %1704 = vmatpush1.bf16.msra.mxu0 %v1680
        %1705 = vmatprep.subr.bf16.mxu0 0
        %1706 = vmatpush1.bf16.msra.mxu0 0
        %1707 = vmatprep.subr.bf16.mxu0 0
        %1708 = vmatpush1.bf16.msra.mxu0 0
        %1709 = vmatprep.subr.bf16.mxu0 0
        %1710 = vmatpush1.bf16.msra.mxu0 0
        %1711 = vmatprep.subr.bf16.mxu0 0
        %1712 = vmatpush1.bf16.msra.mxu0 0
        %1713 = vmatprep.subr.bf16.mxu0 0
        %1714 = vmatpush1.bf16.msra.mxu0 0
        %1715 = vmatprep.subr.bf16.mxu0 0
        %1716 = vmatpush1.bf16.msra.mxu0 0
        %1717 = vmatprep.subr.bf16.mxu0 0
        %1718 = vmatpush1.bf16.msra.mxu0 0
        %1719 = vmatprep.subr.bf16.mxu0 0
        %1720 = vmatpush1.bf16.msra.mxu0 0
        %1721 = vmatprep.mubr.bf16.mxu0 0
        %1722 = vmatmul.mubr.bf16.gmra.mrb[0].mxu0 %v1617
        %v1723 = vpop.f32.mrb[0].mxu0
        %v1724 = vadd.f32 %v1639, %v1723
        %v1725 = vpop.f32.mrb[0].mxu0
        %v1726 = vpop.f32.mrb[0].mxu0
        %v1727 = vpop.f32.mrb[0].mxu0
        %1728 = vdwg.mxu0
        %v1729 = vadd.f32 %v1724, %v705
        %v1730 = vld [vmem:[%s12] sm:$0x1]
        %v1731 = vld [vmem:[%s13] sm:$0x1]
        %1732 = vadd.xlane.f32.xlu0 %v1729
        %v1733 = vpop.xlane.xlu0 %1732
        %v1734 = vmul.f32 %v1733, %v716
        %v1735 = vsub.f32 %v1729, %v1734
        %v1736 = vmul.f32 %v1735, %v1735
        %1737 = vadd.xlane.f32.xlu0 %v1736
        %v1738 = vpop.xlane.xlu0 %1737
        %v1739 = vmul.f32 %v1738, %v716
        %v1740 = vadd.f32 %v1739, 1e-05
        %v1741 = vrsqrt.pop %v1740
        %v1742 = vmul.f32 %v1735, %v1741
        %v1744 = vlaneseq
        %v1745 = vshrl.u32 %v1744, 7
        %v1746 = vsub.s32 0, %v1745
        %v1747 = vrot.slane %v1730, %v1746
        %v1749 = vmul.f32 %v1742, %v1747
        %v1751 = vlaneseq
        %v1752 = vshrl.u32 %v1751, 7
        %v1753 = vsub.s32 0, %v1752
        %v1754 = vrot.slane %v1731, %v1753
        %v1756 = vadd.f32 %v1749, %v1754
        %v1757 = vpack.c.bf16 %v1756, %v1756
        %v1758 = vld [vmem:[#allocation11] sm:$0xff]
        %v1759 = vld [vmem:[#allocation11 + $0x8] sm:$0xff]
        %v1760 = vld [vmem:[#allocation11 + $0x10] sm:$0xff]
        %v1761 = vld [vmem:[#allocation11 + $0x18] sm:$0xff]
        %v1762 = vld [vmem:[#allocation11 + $0x20] sm:$0xff]
        %v1763 = vld [vmem:[#allocation11 + $0x28] sm:$0xff]
        %v1764 = vld [vmem:[#allocation11 + $0x30] sm:$0xff]
        %v1765 = vld [vmem:[#allocation11 + $0x38] sm:$0xff]
        %v1766 = vld [vmem:[#allocation11 + $0x40] sm:$0xff]
        %v1767 = vld [vmem:[#allocation11 + $0x48] sm:$0xff]
        %v1768 = vld [vmem:[#allocation11 + $0x50] sm:$0xff]
        %v1769 = vld [vmem:[#allocation11 + $0x58] sm:$0xff]
        %v1770 = vld [vmem:[#allocation11 + $0x60] sm:$0xff]
        %v1771 = vld [vmem:[#allocation11 + $0x68] sm:$0xff]
        %v1772 = vld [vmem:[#allocation11 + $0x70] sm:$0xff]
        %v1773 = vld [vmem:[#allocation11 + $0x78] sm:$0xff]
        %v1774 = vld [vmem:[#allocation11 + $0x80] sm:$0xff]
        %v1775 = vld [vmem:[#allocation11 + $0x88] sm:$0xff]
        %v1776 = vld [vmem:[#allocation11 + $0x90] sm:$0xff]
        %v1777 = vld [vmem:[#allocation11 + $0x98] sm:$0xff]
        %v1778 = vld [vmem:[#allocation11 + $0xa0] sm:$0xff]
        %v1779 = vld [vmem:[#allocation11 + $0xa8] sm:$0xff]
        %v1780 = vld [vmem:[#allocation11 + $0xb0] sm:$0xff]
        %v1781 = vld [vmem:[#allocation11 + $0xb8] sm:$0xff]
        %v1782 = vld [vmem:[#allocation11 + $0xc0] sm:$0xff]
        %v1783 = vld [vmem:[#allocation11 + $0xc8] sm:$0xff]
        %v1784 = vld [vmem:[#allocation11 + $0xd0] sm:$0xff]
        %v1785 = vld [vmem:[#allocation11 + $0xd8] sm:$0xff]
        %v1786 = vld [vmem:[#allocation11 + $0xe0] sm:$0xff]
        %v1787 = vld [vmem:[#allocation11 + $0xe8] sm:$0xff]
        %v1788 = vld [vmem:[#allocation11 + $0xf0] sm:$0xff]
        %v1789 = vld [vmem:[#allocation11 + $0xf8] sm:$0xff]
        %v1790 = vld [vmem:[%s15] sm:$0xf]
        %v1792 = vlaneseq
        %v1793 = vshrl.u32 %v1792, 7
        %v1794 = vsub.s32 0, %v1793
        %v1795 = vrot.slane %v1790, %v1794
        %v1796 = vlaneseq
        %v1797 = vshrl.u32 %v1796, 7
        %v1798 = vsub.s32 1, %v1797
        %v1799 = vrot.slane %v1790, %v1798
        %v1800 = vlaneseq
        %v1801 = vshrl.u32 %v1800, 7
        %v1802 = vsub.s32 2, %v1801
        %v1803 = vrot.slane %v1790, %v1802
        %v1804 = vlaneseq
        %v1805 = vshrl.u32 %v1804, 7
        %v1806 = vsub.s32 3, %v1805
        %v1807 = vrot.slane %v1790, %v1806
        %v1844 = vunpack.c.l.b16 %v1758
        %v1845 = vunpack.c.h.b16 %v1758
        %v1846 = vunpack.c.l.b16 %v1759
        %v1847 = vunpack.c.h.b16 %v1759
        %v1848 = vunpack.c.l.b16 %v1760
        %v1849 = vunpack.c.h.b16 %v1760
        %v1850 = vunpack.c.l.b16 %v1761
        %v1851 = vunpack.c.h.b16 %v1761
        %v1852 = vunpack.c.l.b16 %v1762
        %v1853 = vunpack.c.h.b16 %v1762
        %v1854 = vunpack.c.l.b16 %v1763
        %v1855 = vunpack.c.h.b16 %v1763
        %v1856 = vunpack.c.l.b16 %v1764
        %v1857 = vunpack.c.h.b16 %v1764
        %v1858 = vunpack.c.l.b16 %v1765
        %v1859 = vunpack.c.h.b16 %v1765
        %v1860 = vunpack.c.l.b16 %v1766
        %v1861 = vunpack.c.h.b16 %v1766
        %v1862 = vunpack.c.l.b16 %v1767
        %v1863 = vunpack.c.h.b16 %v1767
        %v1864 = vunpack.c.l.b16 %v1768
        %v1865 = vunpack.c.h.b16 %v1768
        %v1866 = vunpack.c.l.b16 %v1769
        %v1867 = vunpack.c.h.b16 %v1769
        %v1868 = vunpack.c.l.b16 %v1770
        %v1869 = vunpack.c.h.b16 %v1770
        %v1870 = vunpack.c.l.b16 %v1771
        %v1871 = vunpack.c.h.b16 %v1771
        %v1872 = vunpack.c.l.b16 %v1772
        %v1873 = vunpack.c.h.b16 %v1772
        %v1874 = vunpack.c.l.b16 %v1773
        %v1875 = vunpack.c.h.b16 %v1773
        %v1876 = vunpack.c.l.b16 %v1774
        %v1877 = vunpack.c.h.b16 %v1774
        %v1878 = vunpack.c.l.b16 %v1775
        %v1879 = vunpack.c.h.b16 %v1775
        %v1880 = vunpack.c.l.b16 %v1776
        %v1881 = vunpack.c.h.b16 %v1776
        %v1882 = vunpack.c.l.b16 %v1777
        %v1883 = vunpack.c.h.b16 %v1777
        %v1884 = vunpack.c.l.b16 %v1778
        %v1885 = vunpack.c.h.b16 %v1778
        %v1886 = vunpack.c.l.b16 %v1779
        %v1887 = vunpack.c.h.b16 %v1779
        %v1888 = vunpack.c.l.b16 %v1780
        %v1889 = vunpack.c.h.b16 %v1780
        %v1890 = vunpack.c.l.b16 %v1781
        %v1891 = vunpack.c.h.b16 %v1781
        %v1892 = vunpack.c.l.b16 %v1782
        %v1893 = vunpack.c.h.b16 %v1782
        %v1894 = vunpack.c.l.b16 %v1783
        %v1895 = vunpack.c.h.b16 %v1783
        %v1896 = vunpack.c.l.b16 %v1784
        %v1897 = vunpack.c.h.b16 %v1784
        %v1898 = vunpack.c.l.b16 %v1785
        %v1899 = vunpack.c.h.b16 %v1785
        %v1900 = vunpack.c.l.b16 %v1786
        %v1901 = vunpack.c.h.b16 %v1786
        %v1902 = vunpack.c.l.b16 %v1787
        %v1903 = vunpack.c.h.b16 %v1787
        %v1904 = vunpack.c.l.b16 %v1788
        %v1905 = vunpack.c.h.b16 %v1788
        %v1906 = vunpack.c.l.b16 %v1789
        %v1907 = vunpack.c.h.b16 %v1789
        %v1908 = vpack.c.b16 %v1848, %v1844
        %v1909 = vpack.c.b16 %v1849, %v1845
        %v1910 = vpack.c.b16 %v1850, %v1846
        %v1911 = vpack.c.b16 %v1851, %v1847
        %v1912 = vpack.c.b16 %v1856, %v1852
        %v1913 = vpack.c.b16 %v1857, %v1853
        %v1914 = vpack.c.b16 %v1858, %v1854
        %v1915 = vpack.c.b16 %v1859, %v1855
        %v1916 = vpack.c.b16 %v1864, %v1860
        %v1917 = vpack.c.b16 %v1865, %v1861
        %v1918 = vpack.c.b16 %v1866, %v1862
        %v1919 = vpack.c.b16 %v1867, %v1863
        %v1920 = vpack.c.b16 %v1872, %v1868
        %v1921 = vpack.c.b16 %v1873, %v1869
        %v1922 = vpack.c.b16 %v1874, %v1870
        %v1923 = vpack.c.b16 %v1875, %v1871
        %v1924 = vpack.c.b16 %v1880, %v1876
        %v1925 = vpack.c.b16 %v1881, %v1877
        %v1926 = vpack.c.b16 %v1882, %v1878
        %v1927 = vpack.c.b16 %v1883, %v1879
        %v1928 = vpack.c.b16 %v1888, %v1884
        %v1929 = vpack.c.b16 %v1889, %v1885
        %v1930 = vpack.c.b16 %v1890, %v1886
        %v1931 = vpack.c.b16 %v1891, %v1887
        %v1932 = vpack.c.b16 %v1896, %v1892
        %v1933 = vpack.c.b16 %v1897, %v1893
        %v1934 = vpack.c.b16 %v1898, %v1894
        %v1935 = vpack.c.b16 %v1899, %v1895
        %v1936 = vpack.c.b16 %v1904, %v1900
        %v1937 = vpack.c.b16 %v1905, %v1901
        %v1938 = vpack.c.b16 %v1906, %v1902
        %v1939 = vpack.c.b16 %v1907, %v1903
        %1972 = vmatprep.subr.bf16.mxu0 %v1909
        %1973 = vmatpush1.bf16.msra.mxu0 %v1908
        %1974 = vmatprep.subr.bf16.mxu0 %v1913
        %1975 = vmatpush1.bf16.msra.mxu0 %v1912
        %1976 = vmatprep.subr.bf16.mxu0 %v1917
        %1977 = vmatpush1.bf16.msra.mxu0 %v1916
        %1978 = vmatprep.subr.bf16.mxu0 %v1921
        %1979 = vmatpush1.bf16.msra.mxu0 %v1920
        %1980 = vmatprep.subr.bf16.mxu0 %v1925
        %1981 = vmatpush1.bf16.msra.mxu0 %v1924
        %1982 = vmatprep.subr.bf16.mxu0 %v1929
        %1983 = vmatpush1.bf16.msra.mxu0 %v1928
        %1984 = vmatprep.subr.bf16.mxu0 %v1933
        %1985 = vmatpush1.bf16.msra.mxu0 %v1932
        %1986 = vmatprep.subr.bf16.mxu0 %v1937
        %1987 = vmatpush1.bf16.msra.mxu0 %v1936
        %1988 = vmatprep.subr.bf16.mxu0 0
        %1989 = vmatpush1.bf16.msra.mxu0 0
        %1990 = vmatprep.subr.bf16.mxu0 0
        %1991 = vmatpush1.bf16.msra.mxu0 0
        %1992 = vmatprep.subr.bf16.mxu0 0
        %1993 = vmatpush1.bf16.msra.mxu0 0
        %1994 = vmatprep.subr.bf16.mxu0 0
        %1995 = vmatpush1.bf16.msra.mxu0 0
        %1996 = vmatprep.subr.bf16.mxu0 0
        %1997 = vmatpush1.bf16.msra.mxu0 0
        %1998 = vmatprep.subr.bf16.mxu0 0
        %1999 = vmatpush1.bf16.msra.mxu0 0
        %2000 = vmatprep.subr.bf16.mxu0 0
        %2001 = vmatpush1.bf16.msra.mxu0 0
        %2002 = vmatprep.subr.bf16.mxu0 0
        %2003 = vmatpush1.bf16.msra.mxu0 0
        %2004 = vmatprep.mubr.bf16.mxu0 0
        %2005 = vmatmul.mubr.bf16.gmra.mrb[0].mxu0 %v1757
        %v2006 = vpop.f32.mrb[0].mxu0
        %v2007 = vadd.f32 %v1795, %v2006
        %v2008 = vpop.f32.mrb[0].mxu0
        %v2009 = vadd.f32 %v1799, %v2008
        %v2010 = vpop.f32.mrb[0].mxu0
        %v2011 = vpop.f32.mrb[0].mxu0
        %2012 = vdwg.mxu0
        %2013 = vmatprep.subr.bf16.mxu0 %v1911
        %2014 = vmatpush1.bf16.msra.mxu0 %v1910
        %2015 = vmatprep.subr.bf16.mxu0 %v1915
        %2016 = vmatpush1.bf16.msra.mxu0 %v1914
        %2017 = vmatprep.subr.bf16.mxu0 %v1919
        %2018 = vmatpush1.bf16.msra.mxu0 %v1918
        %2019 = vmatprep.subr.bf16.mxu0 %v1923
        %2020 = vmatpush1.bf16.msra.mxu0 %v1922
        %2021 = vmatprep.subr.bf16.mxu0 %v1927
        %2022 = vmatpush1.bf16.msra.mxu0 %v1926
        %2023 = vmatprep.subr.bf16.mxu0 %v1931
        %2024 = vmatpush1.bf16.msra.mxu0 %v1930
        %2025 = vmatprep.subr.bf16.mxu0 %v1935
        %2026 = vmatpush1.bf16.msra.mxu0 %v1934
        %2027 = vmatprep.subr.bf16.mxu0 %v1939
        %2028 = vmatpush1.bf16.msra.mxu0 %v1938
        %2029 = vmatprep.subr.bf16.mxu0 0
        %2030 = vmatpush1.bf16.msra.mxu0 0
        %2031 = vmatprep.subr.bf16.mxu0 0
        %2032 = vmatpush1.bf16.msra.mxu0 0
        %2033 = vmatprep.subr.bf16.mxu0 0
        %2034 = vmatpush1.bf16.msra.mxu0 0
        %2035 = vmatprep.subr.bf16.mxu0 0
        %2036 = vmatpush1.bf16.msra.mxu0 0
        %2037 = vmatprep.subr.bf16.mxu0 0
        %2038 = vmatpush1.bf16.msra.mxu0 0
        %2039 = vmatprep.subr.bf16.mxu0 0
        %2040 = vmatpush1.bf16.msra.mxu0 0
        %2041 = vmatprep.subr.bf16.mxu0 0
        %2042 = vmatpush1.bf16.msra.mxu0 0
        %2043 = vmatprep.subr.bf16.mxu0 0
        %2044 = vmatpush1.bf16.msra.mxu0 0
        %2045 = vmatprep.mubr.bf16.mxu0 0
        %2046 = vmatmul.mubr.bf16.gmra.mrb[0].mxu0 %v1757
        %v2047 = vpop.f32.mrb[0].mxu0
        %v2048 = vadd.f32 %v1803, %v2047
        %v2049 = vpop.f32.mrb[0].mxu0
        %v2050 = vadd.f32 %v1807, %v2049
        %v2051 = vpop.f32.mrb[0].mxu0
        %v2052 = vpop.f32.mrb[0].mxu0
        %2053 = vdwg.mxu0
        %v2054 = vmul.f32 %v2007, 0.5
        %v2055 = vmul.f32 %v2009, 0.5
        %v2056 = vmul.f32 %v2048, 0.5
        %v2057 = vmul.f32 %v2050, 0.5
        %v2058 = vmul.f32 %v2007, 0.70710677
        %v2059 = vmul.f32 %v2009, 0.70710677
        %v2060 = vmul.f32 %v2048, 0.70710677
        %v2061 = vmul.f32 %v2050, 0.70710677
        %vm2062 = vcmp.ge.f32.partialorder %v2058, 0.0
        %vm2063 = vcmp.ge.f32.partialorder %v2059, 0.0
        %vm2064 = vcmp.ge.f32.partialorder %v2060, 0.0
        %vm2065 = vcmp.ge.f32.partialorder %v2061, 0.0
        %v2066 = vsel %vm2062, 1.0, -1.0
        %v2067 = vsel %vm2063, 1.0, -1.0
        %v2068 = vsel %vm2064, 1.0, -1.0
        %v2069 = vsel %vm2065, 1.0, -1.0
        %v2070 = vand.u32 2147483647, %v2058
        %v2071 = vand.u32 2147483647, %v2059
        %v2072 = vand.u32 2147483647, %v2060
        %v2073 = vand.u32 2147483647, %v2061
        %v2074 = vmul.f32 %v2070, 0.3275911
        %v2075 = vmul.f32 %v2071, 0.3275911
        %v2076 = vmul.f32 %v2072, 0.3275911
        %v2077 = vmul.f32 %v2073, 0.3275911
        %v2078 = vadd.f32 %v2074, 1.0
        %v2079 = vadd.f32 %v2075, 1.0
        %v2080 = vadd.f32 %v2076, 1.0
        %v2081 = vadd.f32 %v2077, 1.0
        %v2082 = vrcp.pop %v2078
        %v2083 = vrcp.pop %v2079
        %v2084 = vrcp.pop %v2080
        %v2085 = vrcp.pop %v2081
        %v2086 = vmul.f32 %v2082, 1.0614054
        %v2087 = vmul.f32 %v2083, 1.0614054
        %v2088 = vmul.f32 %v2084, 1.0614054
        %v2089 = vmul.f32 %v2085, 1.0614054
        %v2090 = vadd.f32 %v2086, -1.4531521
        %v2091 = vadd.f32 %v2087, -1.4531521
        %v2092 = vadd.f32 %v2088, -1.4531521
        %v2093 = vadd.f32 %v2089, -1.4531521
        %v2094 = vmul.f32 %v2090, %v2082
        %v2095 = vmul.f32 %v2091, %v2083
        %v2096 = vmul.f32 %v2092, %v2084
        %v2097 = vmul.f32 %v2093, %v2085
        %v2098 = vadd.f32 %v2094, 1.4214138
        %v2099 = vadd.f32 %v2095, 1.4214138
        %v2100 = vadd.f32 %v2096, 1.4214138
        %v2101 = vadd.f32 %v2097, 1.4214138
        %v2102 = vmul.f32 %v2098, %v2082
        %v2103 = vmul.f32 %v2099, %v2083
        %v2104 = vmul.f32 %v2100, %v2084
        %v2105 = vmul.f32 %v2101, %v2085
        %v2106 = vadd.f32 %v2102, -0.28449672
        %v2107 = vadd.f32 %v2103, -0.28449672
        %v2108 = vadd.f32 %v2104, -0.28449672
        %v2109 = vadd.f32 %v2105, -0.28449672
        %v2110 = vmul.f32 %v2106, %v2082
        %v2111 = vmul.f32 %v2107, %v2083
        %v2112 = vmul.f32 %v2108, %v2084
        %v2113 = vmul.f32 %v2109, %v2085
        %v2114 = vadd.f32 %v2110, 0.2548296
        %v2115 = vadd.f32 %v2111, 0.2548296
        %v2116 = vadd.f32 %v2112, 0.2548296
        %v2117 = vadd.f32 %v2113, 0.2548296
        %v2118 = vmul.f32 %v2114, %v2082
        %v2119 = vmul.f32 %v2115, %v2083
        %v2120 = vmul.f32 %v2116, %v2084
        %v2121 = vmul.f32 %v2117, %v2085
        %v2122 = vsub.f32 0.0, %v2070
        %v2123 = vsub.f32 0.0, %v2071
        %v2124 = vsub.f32 0.0, %v2072
        %v2125 = vsub.f32 0.0, %v2073
        %v2126 = vmul.f32 %v2122, %v2070
        %v2127 = vmul.f32 %v2123, %v2071
        %v2128 = vmul.f32 %v2124, %v2072
        %v2129 = vmul.f32 %v2125, %v2073
        %v2130 = vmul.f32 %v2126, 1.442695
        %v2131 = vpow.pop %v2130
        %v2132 = vmul.f32 %v2127, 1.442695
        %v2133 = vpow.pop %v2132
        %v2134 = vmul.f32 %v2128, 1.442695
        %v2135 = vpow.pop %v2134
        %v2136 = vmul.f32 %v2129, 1.442695
        %v2137 = vpow.pop %v2136
        %v2138 = vmul.f32 %v2118, %v2131
        %v2139 = vmul.f32 %v2119, %v2133
        %v2140 = vmul.f32 %v2120, %v2135
        %v2141 = vmul.f32 %v2121, %v2137
        %v2142 = vsub.f32 1.0, %v2138
        %v2143 = vsub.f32 1.0, %v2139
        %v2144 = vsub.f32 1.0, %v2140
        %v2145 = vsub.f32 1.0, %v2141
        %v2146 = vmul.f32 %v2066, %v2142
        %v2147 = vmul.f32 %v2067, %v2143
        %v2148 = vmul.f32 %v2068, %v2144
        %v2149 = vmul.f32 %v2069, %v2145
        %v2150 = vadd.f32 %v2146, 1.0
        %v2151 = vadd.f32 %v2147, 1.0
        %v2152 = vadd.f32 %v2148, 1.0
        %v2153 = vadd.f32 %v2149, 1.0
        %v2154 = vmul.f32 %v2054, %v2150
        %v2155 = vmul.f32 %v2055, %v2151
        %v2156 = vmul.f32 %v2056, %v2152
        %v2157 = vmul.f32 %v2057, %v2153
        %v2158 = vpack.c.bf16 %v2154, %v2154
        %v2159 = vpack.c.bf16 %v2155, %v2155
        %v2160 = vpack.c.bf16 %v2156, %v2156
        %v2161 = vpack.c.bf16 %v2157, %v2157
        %v2162 = vld [vmem:[#allocation13] sm:$0xf]
        %v2163 = vld [vmem:[#allocation13 + $0x4] sm:$0xf]
        %v2164 = vld [vmem:[#allocation13 + $0x8] sm:$0xf]
        %v2165 = vld [vmem:[#allocation13 + $0xc] sm:$0xf]
        %v2166 = vld [vmem:[#allocation13 + $0x10] sm:$0xf]
        %v2167 = vld [vmem:[#allocation13 + $0x14] sm:$0xf]
        %v2168 = vld [vmem:[#allocation13 + $0x18] sm:$0xf]
        %v2169 = vld [vmem:[#allocation13 + $0x1c] sm:$0xf]
        %v2170 = vld [vmem:[#allocation13 + $0x20] sm:$0xf]
        %v2171 = vld [vmem:[#allocation13 + $0x24] sm:$0xf]
        %v2172 = vld [vmem:[#allocation13 + $0x28] sm:$0xf]
        %v2173 = vld [vmem:[#allocation13 + $0x2c] sm:$0xf]
        %v2174 = vld [vmem:[#allocation13 + $0x30] sm:$0xf]
        %v2175 = vld [vmem:[#allocation13 + $0x34] sm:$0xf]
        %v2176 = vld [vmem:[#allocation13 + $0x38] sm:$0xf]
        %v2177 = vld [vmem:[#allocation13 + $0x3c] sm:$0xf]
        %v2178 = vld [vmem:[#allocation13 + $0x40] sm:$0xf]
        %v2179 = vld [vmem:[#allocation13 + $0x44] sm:$0xf]
        %v2180 = vld [vmem:[#allocation13 + $0x48] sm:$0xf]
        %v2181 = vld [vmem:[#allocation13 + $0x4c] sm:$0xf]
        %v2182 = vld [vmem:[#allocation13 + $0x50] sm:$0xf]
        %v2183 = vld [vmem:[#allocation13 + $0x54] sm:$0xf]
        %v2184 = vld [vmem:[#allocation13 + $0x58] sm:$0xf]
        %v2185 = vld [vmem:[#allocation13 + $0x5c] sm:$0xf]
        %v2186 = vld [vmem:[#allocation13 + $0x60] sm:$0xf]
        %v2187 = vld [vmem:[#allocation13 + $0x64] sm:$0xf]
        %v2188 = vld [vmem:[#allocation13 + $0x68] sm:$0xf]
        %v2189 = vld [vmem:[#allocation13 + $0x6c] sm:$0xf]
        %v2190 = vld [vmem:[#allocation13 + $0x70] sm:$0xf]
        %v2191 = vld [vmem:[#allocation13 + $0x74] sm:$0xf]
        %v2192 = vld [vmem:[#allocation13 + $0x78] sm:$0xf]
        %v2193 = vld [vmem:[#allocation13 + $0x7c] sm:$0xf]
        %v2194 = vld [vmem:[#allocation13 + $0x80] sm:$0xf]
        %v2195 = vld [vmem:[#allocation13 + $0x84] sm:$0xf]
        %v2196 = vld [vmem:[#allocation13 + $0x88] sm:$0xf]
        %v2197 = vld [vmem:[#allocation13 + $0x8c] sm:$0xf]
        %v2198 = vld [vmem:[#allocation13 + $0x90] sm:$0xf]
        %v2199 = vld [vmem:[#allocation13 + $0x94] sm:$0xf]
        %v2200 = vld [vmem:[#allocation13 + $0x98] sm:$0xf]
        %v2201 = vld [vmem:[#allocation13 + $0x9c] sm:$0xf]
        %v2202 = vld [vmem:[#allocation13 + $0xa0] sm:$0xf]
        %v2203 = vld [vmem:[#allocation13 + $0xa4] sm:$0xf]
        %v2204 = vld [vmem:[#allocation13 + $0xa8] sm:$0xf]
        %v2205 = vld [vmem:[#allocation13 + $0xac] sm:$0xf]
        %v2206 = vld [vmem:[#allocation13 + $0xb0] sm:$0xf]
        %v2207 = vld [vmem:[#allocation13 + $0xb4] sm:$0xf]
        %v2208 = vld [vmem:[#allocation13 + $0xb8] sm:$0xf]
        %v2209 = vld [vmem:[#allocation13 + $0xbc] sm:$0xf]
        %v2210 = vld [vmem:[#allocation13 + $0xc0] sm:$0xf]
        %v2211 = vld [vmem:[#allocation13 + $0xc4] sm:$0xf]
        %v2212 = vld [vmem:[#allocation13 + $0xc8] sm:$0xf]
        %v2213 = vld [vmem:[#allocation13 + $0xcc] sm:$0xf]
        %v2214 = vld [vmem:[#allocation13 + $0xd0] sm:$0xf]
        %v2215 = vld [vmem:[#allocation13 + $0xd4] sm:$0xf]
        %v2216 = vld [vmem:[#allocation13 + $0xd8] sm:$0xf]
        %v2217 = vld [vmem:[#allocation13 + $0xdc] sm:$0xf]
        %v2218 = vld [vmem:[#allocation13 + $0xe0] sm:$0xf]
        %v2219 = vld [vmem:[#allocation13 + $0xe4] sm:$0xf]
        %v2220 = vld [vmem:[#allocation13 + $0xe8] sm:$0xf]
        %v2221 = vld [vmem:[#allocation13 + $0xec] sm:$0xf]
        %v2222 = vld [vmem:[#allocation13 + $0xf0] sm:$0xf]
        %v2223 = vld [vmem:[#allocation13 + $0xf4] sm:$0xf]
        %v2224 = vld [vmem:[#allocation13 + $0xf8] sm:$0xf]
        %v2225 = vld [vmem:[#allocation13 + $0xfc] sm:$0xf]
        %v2226 = vld [vmem:[%s17] sm:$0x1]
        %v2228 = vlaneseq
        %v2229 = vshrl.u32 %v2228, 7
        %v2230 = vsub.s32 0, %v2229
        %v2231 = vrot.slane %v2226, %v2230
        %v2297 = vunpack.c.l.b16 %v2162
        %v2298 = vunpack.c.l.b16 %v2163
        %v2299 = vunpack.c.l.b16 %v2164
        %v2300 = vunpack.c.l.b16 %v2165
        %v2301 = vunpack.c.l.b16 %v2166
        %v2302 = vunpack.c.l.b16 %v2167
        %v2303 = vunpack.c.l.b16 %v2168
        %v2304 = vunpack.c.l.b16 %v2169
        %v2305 = vunpack.c.l.b16 %v2170
        %v2306 = vunpack.c.l.b16 %v2171
        %v2307 = vunpack.c.l.b16 %v2172
        %v2308 = vunpack.c.l.b16 %v2173
        %v2309 = vunpack.c.l.b16 %v2174
        %v2310 = vunpack.c.l.b16 %v2175
        %v2311 = vunpack.c.l.b16 %v2176
        %v2312 = vunpack.c.l.b16 %v2177
        %v2313 = vunpack.c.l.b16 %v2178
        %v2314 = vunpack.c.l.b16 %v2179
        %v2315 = vunpack.c.l.b16 %v2180
        %v2316 = vunpack.c.l.b16 %v2181
        %v2317 = vunpack.c.l.b16 %v2182
        %v2318 = vunpack.c.l.b16 %v2183
        %v2319 = vunpack.c.l.b16 %v2184
        %v2320 = vunpack.c.l.b16 %v2185
        %v2321 = vunpack.c.l.b16 %v2186
        %v2322 = vunpack.c.l.b16 %v2187
        %v2323 = vunpack.c.l.b16 %v2188
        %v2324 = vunpack.c.l.b16 %v2189
        %v2325 = vunpack.c.l.b16 %v2190
        %v2326 = vunpack.c.l.b16 %v2191
        %v2327 = vunpack.c.l.b16 %v2192
        %v2328 = vunpack.c.l.b16 %v2193
        %v2329 = vunpack.c.l.b16 %v2194
        %v2330 = vunpack.c.l.b16 %v2195
        %v2331 = vunpack.c.l.b16 %v2196
        %v2332 = vunpack.c.l.b16 %v2197
        %v2333 = vunpack.c.l.b16 %v2198
        %v2334 = vunpack.c.l.b16 %v2199
        %v2335 = vunpack.c.l.b16 %v2200
        %v2336 = vunpack.c.l.b16 %v2201
        %v2337 = vunpack.c.l.b16 %v2202
        %v2338 = vunpack.c.l.b16 %v2203
        %v2339 = vunpack.c.l.b16 %v2204
        %v2340 = vunpack.c.l.b16 %v2205
        %v2341 = vunpack.c.l.b16 %v2206
        %v2342 = vunpack.c.l.b16 %v2207
        %v2343 = vunpack.c.l.b16 %v2208
        %v2344 = vunpack.c.l.b16 %v2209
        %v2345 = vunpack.c.l.b16 %v2210
        %v2346 = vunpack.c.l.b16 %v2211
        %v2347 = vunpack.c.l.b16 %v2212
        %v2348 = vunpack.c.l.b16 %v2213
        %v2349 = vunpack.c.l.b16 %v2214
        %v2350 = vunpack.c.l.b16 %v2215
        %v2351 = vunpack.c.l.b16 %v2216
        %v2352 = vunpack.c.l.b16 %v2217
        %v2353 = vunpack.c.l.b16 %v2218
        %v2354 = vunpack.c.l.b16 %v2219
        %v2355 = vunpack.c.l.b16 %v2220
        %v2356 = vunpack.c.l.b16 %v2221
        %v2357 = vunpack.c.l.b16 %v2222
        %v2358 = vunpack.c.l.b16 %v2223
        %v2359 = vunpack.c.l.b16 %v2224
        %v2360 = vunpack.c.l.b16 %v2225
        %v2361 = vpack.c.b16 %v2298, %v2297
        %v2362 = vpack.c.b16 %v2300, %v2299
        %v2363 = vpack.c.b16 %v2302, %v2301
        %v2364 = vpack.c.b16 %v2304, %v2303
        %v2365 = vpack.c.b16 %v2306, %v2305
        %v2366 = vpack.c.b16 %v2308, %v2307
        %v2367 = vpack.c.b16 %v2310, %v2309
        %v2368 = vpack.c.b16 %v2312, %v2311
        %v2369 = vpack.c.b16 %v2314, %v2313
        %v2370 = vpack.c.b16 %v2316, %v2315
        %v2371 = vpack.c.b16 %v2318, %v2317
        %v2372 = vpack.c.b16 %v2320, %v2319
        %v2373 = vpack.c.b16 %v2322, %v2321
        %v2374 = vpack.c.b16 %v2324, %v2323
        %v2375 = vpack.c.b16 %v2326, %v2325
        %v2376 = vpack.c.b16 %v2328, %v2327
        %v2377 = vpack.c.b16 %v2330, %v2329
        %v2378 = vpack.c.b16 %v2332, %v2331
        %v2379 = vpack.c.b16 %v2334, %v2333
        %v2380 = vpack.c.b16 %v2336, %v2335
        %v2381 = vpack.c.b16 %v2338, %v2337
        %v2382 = vpack.c.b16 %v2340, %v2339
        %v2383 = vpack.c.b16 %v2342, %v2341
        %v2384 = vpack.c.b16 %v2344, %v2343
        %v2385 = vpack.c.b16 %v2346, %v2345
        %v2386 = vpack.c.b16 %v2348, %v2347
        %v2387 = vpack.c.b16 %v2350, %v2349
        %v2388 = vpack.c.b16 %v2352, %v2351
        %v2389 = vpack.c.b16 %v2354, %v2353
        %v2390 = vpack.c.b16 %v2356, %v2355
        %v2391 = vpack.c.b16 %v2358, %v2357
        %v2392 = vpack.c.b16 %v2360, %v2359
        %2425 = vmatprep.subr.bf16.mxu0 0
        %2426 = vmatpush1.bf16.msra.mxu0 %v2361
        %2427 = vmatprep.subr.bf16.mxu0 0
        %2428 = vmatpush1.bf16.msra.mxu0 %v2362
        %2429 = vmatprep.subr.bf16.mxu0 0
        %2430 = vmatpush1.bf16.msra.mxu0 %v2363
        %2431 = vmatprep.subr.bf16.mxu0 0
        %2432 = vmatpush1.bf16.msra.mxu0 %v2364
        %2433 = vmatprep.subr.bf16.mxu0 0
        %2434 = vmatpush1.bf16.msra.mxu0 %v2365
        %2435 = vmatprep.subr.bf16.mxu0 0
        %2436 = vmatpush1.bf16.msra.mxu0 %v2366
        %2437 = vmatprep.subr.bf16.mxu0 0
        %2438 = vmatpush1.bf16.msra.mxu0 %v2367
        %2439 = vmatprep.subr.bf16.mxu0 0
        %2440 = vmatpush1.bf16.msra.mxu0 %v2368
        %2441 = vmatprep.subr.bf16.mxu0 0
        %2442 = vmatpush1.bf16.msra.mxu0 %v2369
        %2443 = vmatprep.subr.bf16.mxu0 0
        %2444 = vmatpush1.bf16.msra.mxu0 %v2370
        %2445 = vmatprep.subr.bf16.mxu0 0
        %2446 = vmatpush1.bf16.msra.mxu0 %v2371
        %2447 = vmatprep.subr.bf16.mxu0 0
        %2448 = vmatpush1.bf16.msra.mxu0 %v2372
        %2449 = vmatprep.subr.bf16.mxu0 0
        %2450 = vmatpush1.bf16.msra.mxu0 %v2373
        %2451 = vmatprep.subr.bf16.mxu0 0
        %2452 = vmatpush1.bf16.msra.mxu0 %v2374
        %2453 = vmatprep.subr.bf16.mxu0 0
        %2454 = vmatpush1.bf16.msra.mxu0 %v2375
        %2455 = vmatprep.subr.bf16.mxu0 0
        %2456 = vmatpush1.bf16.msra.mxu0 %v2376
        %2457 = vmatprep.mubr.bf16.mxu0 %v2159
        %2458 = vmatmul.mubr.bf16.gmra.mrb[0].mxu0 %v2158
        %v2459 = vpop.f32.mrb[0].mxu0
        %v2460 = vadd.f32 %v2231, %v2459
        %v2461 = vpop.f32.mrb[0].mxu0
        %v2462 = vpop.f32.mrb[0].mxu0
        %v2463 = vpop.f32.mrb[0].mxu0
        %2464 = vdwg.mxu0
        %2465 = vmatprep.subr.bf16.mxu0 0
        %2466 = vmatpush1.bf16.msra.mxu0 %v2377
        %2467 = vmatprep.subr.bf16.mxu0 0
        %2468 = vmatpush1.bf16.msra.mxu0 %v2378
        %2469 = vmatprep.subr.bf16.mxu0 0
        %2470 = vmatpush1.bf16.msra.mxu0 %v2379
        %2471 = vmatprep.subr.bf16.mxu0 0
        %2472 = vmatpush1.bf16.msra.mxu0 %v2380
        %2473 = vmatprep.subr.bf16.mxu0 0
        %2474 = vmatpush1.bf16.msra.mxu0 %v2381
        %2475 = vmatprep.subr.bf16.mxu0 0
        %2476 = vmatpush1.bf16.msra.mxu0 %v2382
        %2477 = vmatprep.subr.bf16.mxu0 0
        %2478 = vmatpush1.bf16.msra.mxu0 %v2383
        %2479 = vmatprep.subr.bf16.mxu0 0
        %2480 = vmatpush1.bf16.msra.mxu0 %v2384
        %2481 = vmatprep.subr.bf16.mxu0 0
        %2482 = vmatpush1.bf16.msra.mxu0 %v2385
        %2483 = vmatprep.subr.bf16.mxu0 0
        %2484 = vmatpush1.bf16.msra.mxu0 %v2386
        %2485 = vmatprep.subr.bf16.mxu0 0
        %2486 = vmatpush1.bf16.msra.mxu0 %v2387
        %2487 = vmatprep.subr.bf16.mxu0 0
        %2488 = vmatpush1.bf16.msra.mxu0 %v2388
        %2489 = vmatprep.subr.bf16.mxu0 0
        %2490 = vmatpush1.bf16.msra.mxu0 %v2389
        %2491 = vmatprep.subr.bf16.mxu0 0
        %2492 = vmatpush1.bf16.msra.mxu0 %v2390
        %2493 = vmatprep.subr.bf16.mxu0 0
        %2494 = vmatpush1.bf16.msra.mxu0 %v2391
        %2495 = vmatprep.subr.bf16.mxu0 0
        %2496 = vmatpush1.bf16.msra.mxu0 %v2392
        %2497 = vmatprep.mubr.bf16.mxu0 %v2161
        %2498 = vmatmul.mubr.bf16.gmra.mrb[0].mxu0 %v2160
        %v2499 = vpop.f32.mrb[0].mxu0
        %v2500 = vadd.f32 %v2460, %v2499
        %v2501 = vpop.f32.mrb[0].mxu0
        %v2502 = vpop.f32.mrb[0].mxu0
        %v2503 = vpop.f32.mrb[0].mxu0
        %2504 = vdwg.mxu0
        %v2505 = vadd.f32 %v1729, %v2500
        %2506 = vst [vmem:[%s702] sm:$0xff] %v2505
        %s2507 = sand.u32 %s436, 1
        %s2508 = scalar_lea.sflag [#allocation4], %s2507
        %s2509 = sand.u32 %s436, 1
        %s2510 = smul.addr %s2509, 8
        %s2511 = scalar_lea.vmem [#allocation14], %s2510
        // Predicated region
        $region121: #{tpu_custom_call.1} parent=91 // pred_check
          %p2512 = pneg %p446
        $region122: #{tpu_custom_call.1} parent=91 // pred_check_branch
          %2514 = sbr.rel (%p2512) target = $region124
        $region123: #{tpu_custom_call.1} parent=91 // pred_region
          %s2516 = ssub.s32 128, 128
          %2517 = vsyncadd %s2508, %s2516
          %s2518 = smul.addr %s40, 128
          %s2519 = scalar_lea.hbm %s18, %s2518
          %s2521 = sshll.u32 %s2511, 4
          %s2522 = int_to_ptr.vmem [resolvable:$true] %s2521
          %2524 = dma.vmem_to_hbm [thread:$0]  %s2522, 128, %s2519, %s2508
        $region124: #{tpu_custom_call.1} parent=91 // pred_fallthru
          _
      $region92: #{tpu_custom_call.1} parent=5 // pred_fallthru
        _
      %p2525 = scmp.le.s32.totalorder 2, %s35
      // Predicated region
      $region125: #{tpu_custom_call.1} parent=5 // pred_check
        %p2526 = pneg %p2525
      $region126: #{tpu_custom_call.1} parent=5 // pred_check_branch
        %2528 = sbr.rel (%p2526) target = $region128
      $region127: #{tpu_custom_call.1} parent=5 // pred_region
        %s2529 = ssub.s32 %s35, 2
        // Predicated region
        $region129: #{tpu_custom_call.1} parent=127 // pred_check
          %p2530 = pneg %p452
        $region130: #{tpu_custom_call.1} parent=127 // pred_check_branch
          %2532 = sbr.rel (%p2530) target = $region132
        $region131: #{tpu_custom_call.1} parent=127 // pred_region
          %s2533 = sand.u32 %s437, 1
          %s2534 = scalar_lea.sflag [#allocation4], %s2533
          %s2535 = sand.u32 %s437, 1
          %s2536 = smul.addr %s2535, 8
          %s2537 = scalar_lea.vmem [#allocation14], %s2536
          %2538 = dma.done %s2534, 128
        $region132: #{tpu_custom_call.1} parent=127 // pred_fallthru
          _
      $region128: #{tpu_custom_call.1} parent=5 // pred_fallthru
        _
    $region6: #{tpu_custom_call.1} parent=1 // loop_footer
      %s39 = sadd.s32 1, %s35
    $region7: #{tpu_custom_call.1} parent=1 // loop_footer_branch
      %34 = sbr.rel target = $region3
    $region8: #{tpu_custom_call.1} parent=1 // loop_exit
      _
    %2539 = vsyncpa [#allocation3], 1
    %s2540 = scalar_lea.sflag [#allocation3], 1
    %2541 = vsyncpa %s2540, 1
    %2542 = vsyncpa [#allocation6], 1
    %s2543 = scalar_lea.sflag [#allocation6], 1
    %2544 = vsyncpa %s2543, 1
    %2545 = vsyncpa [#allocation9], 1
    %2546 = vsyncpa [#allocation12], 1
    %2547 = vsyncpa [#allocation4], 1
    %s2548 = scalar_lea.sflag [#allocation4], 1
    %2549 = vsyncpa %s2548, 1

</llo_original>
